<compile_context>
chip_gen: v7x
topology: tpu7x:2x2x1
jax: 0.10.0
libtpu: 0.0.40
codegen_flags: <defaults>
</compile_context>

<pallas_src>
import functools

import jax
import jax.numpy as jnp
from jax.experimental import pallas as pl
from jax.experimental.pallas import tpu as pltpu


# ----------------------------------------------------------------------------
# small in-kernel helpers
# ----------------------------------------------------------------------------
def _mxdot(a, b):
    """MXU matmul with bf16 operands and f32 accumulation."""
    return jnp.dot(a.astype(jnp.bfloat16), b.astype(jnp.bfloat16),
                   preferred_element_type=jnp.float32)


def _ln(x, g, b, eps):
    """Row-wise layernorm; g/b are (1, D) rows.  rsqrt -> EUP."""
    mu = jnp.mean(x, axis=-1, keepdims=True)
    xc = x - mu
    var = jnp.mean(xc * xc, axis=-1, keepdims=True)
    return xc * jax.lax.rsqrt(var + eps) * g + b


# packed-parameter slab row layout (all (1, width) vectors in one DMA)
(_LN_PRE_G, _LN_PRE_B, _LN1_G, _LN1_B, _LN2_G, _LN2_B,
 _LN_POST_G, _LN_POST_B, _BO, _FC2_B, _BQ, _BK, _BV) = range(13)
_SLAB_ROWS = 16


# ----------------------------------------------------------------------------
# Fused CLIP visual tower: one pallas_call, grid over batch ("parallel")
# ----------------------------------------------------------------------------
def _visual_kernel(tok_ref, pos_ref, conv_w_ref, slab_ref,
                   wqkv_ref, wo_ref, fc1_w_ref, fc1_b_ref, fc2_w_ref, proj_ref,
                   out_ref, *, S, nh, hd, normalize, eps):
    width = nh * hd
    slab = slab_ref[...]                                   # (16, width) f32

    def row(i):
        return slab[i:i + 1, :]                            # (1, width)

    # ---- patch embedding (cls row of tok is zero) + (cls+pos) addend + ln_pre
    x = _mxdot(tok_ref[...], conv_w_ref[...]) + pos_ref[...]        # (S, width) f32
    x = _ln(x, row(_LN_PRE_G), row(_LN_PRE_B), eps)

    # ---- attention block (pre-LN): one fused QKV GEMM, heads batched in one
    #      dot_general, lane-dense head merge (no scratch, no masked stores)
    h = _ln(x, row(_LN1_G), row(_LN1_B), eps)
    qkv = _mxdot(h, wqkv_ref[...])                                  # (S, 3*width) f32
    q = qkv[:, 0:width] + row(_BQ)
    k = qkv[:, width:2 * width] + row(_BK)
    v = qkv[:, 2 * width:3 * width] + row(_BV)

    def split_heads(m):
        # (S, nh*hd) -> (nh, S, hd); head data stays lane-contiguous
        return jnp.stack([m[:, i * hd:(i + 1) * hd] for i in range(nh)],
                         axis=0).astype(jnp.bfloat16)

    q3, k3, v3 = split_heads(q), split_heads(k), split_heads(v)
    s = jnp.einsum('hqd,hkd->hqk', q3, k3,
                   preferred_element_type=jnp.float32) * (float(hd) ** -0.5)
    s = s - jnp.max(s, axis=-1, keepdims=True)
    p = jnp.exp(s)
    p = p / jnp.sum(p, axis=-1, keepdims=True)                      # exact softmax
    o3 = jnp.einsum('hqk,hkd->hqd', p.astype(jnp.bfloat16), v3,
                    preferred_element_type=jnp.float32)             # (nh, S, hd)
    o = jnp.concatenate([o3[i] for i in range(nh)], axis=-1)        # (S, width)
    x = x + _mxdot(o, wo_ref[...]) + row(_BO)

    # ---- MLP block (QuickGELU, as used by OpenAI CLIP)
    h = _ln(x, row(_LN2_G), row(_LN2_B), eps)
    h = _mxdot(h, fc1_w_ref[...]) + fc1_b_ref[...]
    h = h * jax.nn.sigmoid(1.702 * h)
    x = x + _mxdot(h, fc2_w_ref[...]) + row(_FC2_B)

    # ---- pooled CLS token (row 0 of this batch block) -> ln_post -> proj
    cls = _ln(x[0:1, :], row(_LN_POST_G), row(_LN_POST_B), eps)
    feats = _mxdot(cls, proj_ref[...])                              # (1, embed_dim)
    if normalize:
        n2 = jnp.sum(feats * feats, axis=-1, keepdims=True)
        feats = feats * jax.lax.rsqrt(jnp.maximum(n2, 1e-24))       # F.normalize eps=1e-12
    out_ref[...] = feats.astype(out_ref.dtype)


def _make_patch_tokens(image, P):
    """im2col patchify with a zero 'cls slot' row prepended per batch (glue JAX)."""
    B, C, H, W = image.shape
    Hp, Wp = H // P, W // P
    patches = image.reshape(B, C, Hp, P, Wp, P)
    patches = patches.transpose(0, 2, 4, 1, 3, 5).reshape(B, Hp * Wp, C * P * P)
    return jnp.concatenate(
        [jnp.zeros((B, 1, C * P * P), patches.dtype), patches], axis=1)   # (B, S, C*P*P)


def clip_visual_forward(image, p, *, normalize):
    B, C, H, W = image.shape
    P, width, nh = p["patch"], p["width"], p["heads"]
    hd = width // nh
    S = 1 + (H // P) * (W // P)
    Cpp = C * P * P
    embed_dim = p["proj"].shape[1]
    bf = jnp.bfloat16

    tokens = _make_patch_tokens(image, P).astype(bf)          # bf16: half the DMA bytes
    addend = p["pos"].at[0].add(p["cls"]).astype(jnp.float32)  # (S, width), shared over B

    rows = [p["ln_pre_g"], p["ln_pre_b"], p["ln1_g"], p["ln1_b"],
            p["ln2_g"], p["ln2_b"], p["ln_post_g"], p["ln_post_b"],
            p["bo"], p["fc2_b"],
            p["bqkv"][0:width], p["bqkv"][width:2 * width], p["bqkv"][2 * width:3 * width]]
    slab = jnp.zeros((_SLAB_ROWS, width), jnp.float32).at[:len(rows)].set(
        jnp.stack(rows).astype(jnp.float32))

    const = lambda b: (0, 0)                                   # shared params: block 0 every step
    kernel = functools.partial(_visual_kernel, S=S, nh=nh, hd=hd,
                               normalize=normalize, eps=1e-5)
    out = pl.pallas_call(
        kernel,
        grid=(B,),
        in_specs=[
            pl.BlockSpec((pl.Squeezed(), S, Cpp), lambda b: (b, 0, 0)),   # per-batch tokens
            pl.BlockSpec((S, width), const),                               # cls+pos addend
            pl.BlockSpec((Cpp, width), const),                             # conv1 weight
            pl.BlockSpec((_SLAB_ROWS, width), const),                      # packed (1,width) params
            pl.BlockSpec((width, 3 * width), const),                       # fused QKV weight
            pl.BlockSpec((width, width), const),                           # out_proj weight
            pl.BlockSpec((width, 4 * width), const),                       # fc1 weight
            pl.BlockSpec((1, 4 * width), const),                           # fc1 bias
            pl.BlockSpec((4 * width, width), const),                       # fc2 weight
            pl.BlockSpec((width, embed_dim), const),                       # visual.proj
        ],
        out_specs=pl.BlockSpec((pl.Squeezed(), 1, embed_dim), lambda b: (b, 0, 0)),
        out_shape=jax.ShapeDtypeStruct((B, 1, embed_dim), jnp.float32),
        compiler_params=pltpu.CompilerParams(
            dimension_semantics=("parallel",)),   # v7x: shard batch across the 2 TensorCores
    )(tokens, addend, p["conv_w"].astype(bf), slab,
      p["wqkv"].astype(bf), p["wo"].astype(bf),
      p["fc1_w"].astype(bf), p["fc1_b"].reshape(1, -1).astype(jnp.float32),
      p["fc2_w"].astype(bf), p["proj"].astype(bf))
    return out.reshape(B, embed_dim)


# ----------------------------------------------------------------------------
# Heterogeneous GNN (to_hetero(SAGE-like)): BOTH layers fused in one pallas_call
# ----------------------------------------------------------------------------
def hetero_gnn_forward(x_dict, edge_index_dict, gnn_params):
    node_types = list(x_dict.keys())
    edge_types = list(edge_index_dict.keys())
    nt_idx = {nt: i for i, nt in enumerate(node_types)}
    n_nt, n_et = len(node_types), len(edge_types)
    num_nodes = {nt: x_dict[nt].shape[0] for nt in node_types}

    hidden = gnn_params["layer1"][edge_types[0]][0].shape[1]
    out_dim = gnn_params["layer2"][edge_types[0]][0].shape[1]

    bf = jnp.bfloat16
    inputs = [x_dict[nt].astype(bf) for nt in node_types]
    for et in edge_types:
        # TODO(synk): the scatter-add adjacency build stays in glue JAX; at real
        # graph sizes the dense O(N^2) matrix should become scalar-prefetched CSR
        # offsets (PrefetchScalarGridSpec) driving a gather/segment-sum with a
        # parallel grid over destination-row tiles.
        src, dst = edge_index_dict[et][0], edge_index_dict[et][1]
        counts = jnp.zeros((num_nodes[et[2]], num_nodes[et[0]]),
                           jnp.float32).at[dst, src].add(1.0)
        deg = jnp.clip(jnp.sum(counts, axis=1, keepdims=True), 1.0, None)
        # 0/1 (small-int) counts are exactly representable in bf16; 1/deg stays f32
        inputs += [counts.astype(bf), (1.0 / deg).astype(jnp.float32)]
    for layer in ("layer1", "layer2"):
        for et in edge_types:
            w_l, w_r, b = gnn_params[layer][et]
            inputs += [w_l.astype(bf), w_r.astype(bf),
                       b.reshape(1, -1).astype(jnp.float32)]

    def kernel(*refs):
        x_refs = refs[:n_nt]
        adj_refs = refs[n_nt:n_nt + 2 * n_et]
        w_refs = refs[n_nt + 2 * n_et:n_nt + 8 * n_et]
        out_refs = refs[n_nt + 8 * n_et:]

        def sage_layer(x_vals, wl_wr_b, odim, relu):
            acc = [None] * n_nt
            for j, et in enumerate(edge_types):
                src_t, _, dst_t = et
                a = adj_refs[2 * j][...]                       # bf16 0/1 counts
                invd = adj_refs[2 * j + 1][...]                # f32 (n_dst, 1)
                wl = wl_wr_b[3 * j][...]
                wr = wl_wr_b[3 * j + 1][...]
                b = wl_wr_b[3 * j + 2][...]
                xs = x_vals[nt_idx[src_t]].astype(jnp.bfloat16)
                xd = x_vals[nt_idx[dst_t]].astype(jnp.bfloat16)
                agg = jnp.dot(a, xs, preferred_element_type=jnp.float32) * invd  # exact mean
                contrib = (jnp.dot(agg.astype(jnp.bfloat16), wl,
                                   preferred_element_type=jnp.float32)
                           + b
                           + jnp.dot(xd, wr, preferred_element_type=jnp.float32))
                di = nt_idx[dst_t]
                acc[di] = contrib if acc[di] is None else acc[di] + contrib
            outs = []
            for i in range(n_nt):
                v = acc[i]
                if v is None:
                    # TODO(synk): PyG to_hetero leaves node types with no incoming
                    # edge types un-updated; zeros are a placeholder (not hit here).
                    v = jnp.zeros((x_vals[i].shape[0], odim), jnp.float32)
                outs.append(jnp.maximum(v, 0.0) if relu else v)
            return outs

        x0 = [x_refs[i][...] for i in range(n_nt)]
        h1 = sage_layer(x0, w_refs[:3 * n_et], hidden, relu=True)
        h2 = sage_layer(h1, w_refs[3 * n_et:], out_dim, relu=False)
        for i in range(n_nt):
            out_refs[i][...] = h2[i].astype(out_refs[i].dtype)

    out_shapes = tuple(jax.ShapeDtypeStruct((num_nodes[nt], out_dim), jnp.float32)
                       for nt in node_types)
    # TODO(synk): grid-less call runs on a single TensorCore (fine at toy graph
    # sizes); at real sizes add a parallel grid over dst-row tiles for v7x.
    outs = pl.pallas_call(kernel, out_shape=out_shapes)(*inputs)
    return {nt: outs[i] for i, nt in enumerate(node_types)}


# ----------------------------------------------------------------------------
# Full CLIPGraphMultiTask.forward
# ----------------------------------------------------------------------------
def clip_graph_multitask_forward(image, x_dict, edge_index_dict, target_nodes,
                                 params, *, use_logit_scale=True, normalize=True):
    # encode_image(image, normalize=normalize) -- L2 normalize fused in-kernel
    image_features = clip_visual_forward(image, params["visual"], normalize=normalize)

    # encode_graph(...): the PyTorch forward never passes `normalize` to
    # encode_graph, so graph features are NOT normalized (matching that).
    h = hetero_gnn_forward(x_dict, edge_index_dict, params["gnn"])

    # TODO(synk): the final integer row gather (target_nodes) stays in glue JAX.
    graph_features = {nt: h[nt][jnp.asarray(idx, jnp.int32)]
                      for nt, idx in target_nodes.items()}

    if not use_logit_scale:
        return image_features, graph_features
    return image_features, graph_features, params["logit_scale"]


# ----------------------------------------------------------------------------
# Deterministic parameter construction
# ----------------------------------------------------------------------------
def make_params(key, *, C=3, patch=8, image_hw=(16, 16), width=32, heads=4,
                embed_dim=16, paper_in=20, author_in=10, hidden=32, gnn_out=16):
    ks = iter(jax.random.split(key, 64))

    def w(shape, scale=0.02):
        return scale * jax.random.normal(next(ks), shape, jnp.float32)

    Hp, Wp = image_hw[0] // patch, image_hw[1] // patch
    S = 1 + Hp * Wp                                  # derived, not hard-coded

    visual = dict(
        patch=patch, width=width, heads=heads,
        conv_w=w((C * patch * patch, width)),        # conv1 (no bias, like CLIP)
        cls=w((width,)),
        pos=w((S, width)),
        ln_pre_g=jnp.ones((width,)), ln_pre_b=jnp.zeros((width,)),
        ln1_g=jnp.ones((width,)), ln1_b=jnp.zeros((width,)),
        wqkv=w((width, 3 * width)), bqkv=jnp.zeros((3 * width,)),   # fused QKV
        wo=w((width, width)), bo=jnp.zeros((width,)),
        ln2_g=jnp.ones((width,)), ln2_b=jnp.zeros((width,)),
        fc1_w=w((width, 4 * width)), fc1_b=jnp.zeros((4 * width,)),
        fc2_w=w((4 * width, width)), fc2_b=jnp.zeros((width,)),
        ln_post_g=jnp.ones((width,)), ln_post_b=jnp.zeros((width,)),
        proj=w((width, embed_dim)),                  # visual.proj (no bias)
    )

    # metadata: node types ["paper", "author"], three edge types
    et_pp = ("paper", "cites", "paper")
    et_ap = ("author", "writes", "paper")
    et_pa = ("paper", "rev_writes", "author")
    in_dim = {"paper": paper_in, "author": author_in}

    def et_weights(et, out_dim, in_override=None):
        src_t, _, dst_t = et
        src_d = in_override if in_override is not None else in_dim[src_t]
        dst_d = in_override if in_override is not None else in_dim[dst_t]
        # (lin_l weight, lin_r weight, lin_l bias) -- lin_r has no bias (PyG SAGEConv)
        return (w((src_d, out_dim)), w((dst_d, out_dim)), jnp.zeros((out_dim,)))

    gnn = dict(
        layer1={et: et_weights(et, hidden) for et in (et_pp, et_ap, et_pa)},
        layer2={et: et_weights(et, gnn_out, in_override=hidden)
                for et in (et_pp, et_ap, et_pa)},
    )

    return dict(
        visual=visual,
        gnn=gnn,
        logit_scale=jnp.asarray(jnp.log(1.0 / 0.07), jnp.float32),
    )


# ----------------------------------------------------------------------------
if __name__ == "__main__":
    key = jax.random.PRNGKey(0)
    k_img, k_paper, k_author, k_params = jax.random.split(key, 4)

    B, C, H, W = 2, 3, 16, 16
    image = jax.random.normal(k_img, (B, C, H, W), jnp.float32)

    n_paper, n_author = 12, 6
    x_dict = {
        "paper": jax.random.normal(k_paper, (n_paper, 20), jnp.float32),
        "author": jax.random.normal(k_author, (n_author, 10), jnp.float32),
    }
    edge_index_dict = {
        ("paper", "cites", "paper"): jnp.array(
            [[0, 1, 2, 3, 4, 5, 6, 7, 8, 9], [1, 2, 3, 4, 5, 6, 7, 8, 9, 0]], jnp.int32),
        ("author", "writes", "paper"): jnp.array(
            [[0, 1, 2, 3, 4, 5, 0, 1], [0, 1, 2, 3, 4, 5, 6, 7]], jnp.int32),
        ("paper", "rev_writes", "author"): jnp.array(
            [[0, 1, 2, 3, 4, 5, 6, 7], [0, 1, 2, 3, 4, 5, 0, 1]], jnp.int32),
    }
    target_nodes = {"paper": [0, 3, 7]}              # target_nodes_t = ["paper"]

    params = make_params(k_params, C=C, patch=8, image_hw=(H, W))

    image_features, graph_features, logit_scale = clip_graph_multitask_forward(
        image, x_dict, edge_index_dict, target_nodes, params,
        use_logit_scale=True, normalize=True)

    jax.block_until_ready(image_features)
    for v in graph_features.values():
        jax.block_until_ready(v)
    jax.block_until_ready(logit_scale)

    assert image_features.shape == (B, 16)
    assert graph_features["paper"].shape == (3, 16)
    print("KERNEL_OK")
</pallas_src>

<mosaic_0001>
module attributes {stable_mosaic.version = 11 : i64} {
  func.func @_visual_kernel(%arg0: i32, %arg1: memref<1x5x192xbf16, #tpu.memory_space<vmem>>, %arg2: memref<5x32xf32, #tpu.memory_space<vmem>>, %arg3: memref<192x32xbf16, #tpu.memory_space<vmem>>, %arg4: memref<16x32xf32, #tpu.memory_space<vmem>>, %arg5: memref<32x96xbf16, #tpu.memory_space<vmem>>, %arg6: memref<32x32xbf16, #tpu.memory_space<vmem>>, %arg7: memref<32x128xbf16, #tpu.memory_space<vmem>>, %arg8: memref<1x128xf32, #tpu.memory_space<vmem>>, %arg9: memref<128x32xbf16, #tpu.memory_space<vmem>>, %arg10: memref<32x16xbf16, #tpu.memory_space<vmem>>, %arg11: memref<1x1x16xf32, #tpu.memory_space<vmem>>) attributes {dimension_semantics = [#tpu.dimension_semantics<parallel>], iteration_bounds = array<i64: 2>, scalar_prefetch = 0 : i64, scratch_operands = 0 : i64, tpu.core_type = #tpu.core_type<tc>, window_params = [{transform_indices = @transform_0, window_bounds = array<i64: 1, 5, 192>}, {pipeline_mode = #tpu.pipeline_mode<synchronous>, transform_indices = @transform_1, window_bounds = array<i64: 5, 32>}, {pipeline_mode = #tpu.pipeline_mode<synchronous>, transform_indices = @transform_2, window_bounds = array<i64: 192, 32>}, {pipeline_mode = #tpu.pipeline_mode<synchronous>, transform_indices = @transform_3, window_bounds = array<i64: 16, 32>}, {pipeline_mode = #tpu.pipeline_mode<synchronous>, transform_indices = @transform_4, window_bounds = array<i64: 32, 96>}, {pipeline_mode = #tpu.pipeline_mode<synchronous>, transform_indices = @transform_5, window_bounds = array<i64: 32, 32>}, {pipeline_mode = #tpu.pipeline_mode<synchronous>, transform_indices = @transform_6, window_bounds = array<i64: 32, 128>}, {pipeline_mode = #tpu.pipeline_mode<synchronous>, transform_indices = @transform_7, window_bounds = array<i64: 1, 128>}, {pipeline_mode = #tpu.pipeline_mode<synchronous>, transform_indices = @transform_8, window_bounds = array<i64: 128, 32>}, {pipeline_mode = #tpu.pipeline_mode<synchronous>, transform_indices = @transform_9, window_bounds = array<i64: 32, 16>}, {transform_indices = @transform_10, window_bounds = array<i64: 1, 1, 16>}]} {
    %c0 = arith.constant 0 : index
    %c0_0 = arith.constant 0 : index
    %0 = vector.load %arg4[%c0, %c0_0] : memref<16x32xf32, #tpu.memory_space<vmem>>, vector<16x32xf32>
    %c0_1 = arith.constant 0 : index
    %c0_2 = arith.constant 0 : index
    %c0_3 = arith.constant 0 : index
    %1 = vector.load %arg1[%c0_1, %c0_2, %c0_3] : memref<1x5x192xbf16, #tpu.memory_space<vmem>>, vector<1x5x192xbf16>
    %2 = vector.shape_cast %1 : vector<1x5x192xbf16> to vector<5x192xbf16>
    %c0_4 = arith.constant 0 : index
    %c0_5 = arith.constant 0 : index
    %3 = vector.load %arg3[%c0_4, %c0_5] : memref<192x32xbf16, #tpu.memory_space<vmem>>, vector<192x32xbf16>
    %cst = arith.constant dense<0.000000e+00> : vector<5x32xf32>
    %4 = tpu.matmul %2, %3, %cst {dimension_numbers = #tpu.dot_dimension_numbers<[1], [0], [0], [1], [0, 0, 1, 1], [], []>} : vector<5x192xbf16>, vector<192x32xbf16>, vector<5x32xf32> -> vector<5x32xf32>
    %c0_6 = arith.constant 0 : index
    %c0_7 = arith.constant 0 : index
    %5 = vector.load %arg2[%c0_6, %c0_7] : memref<5x32xf32, #tpu.memory_space<vmem>>, vector<5x32xf32>
    %6 = arith.addf %4, %5 : vector<5x32xf32>
    %7 = vector.extract_strided_slice %0 {offsets = [0, 0], sizes = [1, 32], strides = [1, 1]} : vector<16x32xf32> to vector<1x32xf32>
    %8 = vector.extract_strided_slice %0 {offsets = [1, 0], sizes = [1, 32], strides = [1, 1]} : vector<16x32xf32> to vector<1x32xf32>
    %cst_8 = arith.constant dense<0.000000e+00> : vector<5xf32>
    %9 = vector.multi_reduction <add>, %6, %cst_8 [1] : vector<5x32xf32> to vector<5xf32>
    %10 = vector.shape_cast %9 : vector<5xf32> to vector<5x1xf32>
    %cst_9 = arith.constant 3.200000e+01 : f32
    %11 = vector.broadcast %cst_9 : f32 to vector<5x1xf32>
    %12 = arith.divf %10, %11 : vector<5x1xf32>
    %13 = vector.broadcast %12 : vector<5x1xf32> to vector<5x32xf32>
    %14 = arith.subf %6, %13 : vector<5x32xf32>
    %15 = arith.mulf %14, %14 : vector<5x32xf32>
    %cst_10 = arith.constant dense<0.000000e+00> : vector<5xf32>
    %16 = vector.multi_reduction <add>, %15, %cst_10 [1] : vector<5x32xf32> to vector<5xf32>
    %17 = vector.shape_cast %16 : vector<5xf32> to vector<5x1xf32>
    %cst_11 = arith.constant 3.200000e+01 : f32
    %18 = vector.broadcast %cst_11 : f32 to vector<5x1xf32>
    %19 = arith.divf %17, %18 : vector<5x1xf32>
    %cst_12 = arith.constant 9.99999974E-6 : f32
    %20 = vector.broadcast %cst_12 : f32 to vector<5x1xf32>
    %21 = arith.addf %19, %20 : vector<5x1xf32>
    %22 = math.rsqrt %21 : vector<5x1xf32>
    %23 = vector.broadcast %22 : vector<5x1xf32> to vector<5x32xf32>
    %24 = arith.mulf %14, %23 : vector<5x32xf32>
    %25 = vector.broadcast %7 : vector<1x32xf32> to vector<5x32xf32>
    %26 = arith.mulf %24, %25 : vector<5x32xf32>
    %27 = vector.broadcast %8 : vector<1x32xf32> to vector<5x32xf32>
    %28 = arith.addf %26, %27 : vector<5x32xf32>
    %29 = vector.extract_strided_slice %0 {offsets = [2, 0], sizes = [1, 32], strides = [1, 1]} : vector<16x32xf32> to vector<1x32xf32>
    %30 = vector.extract_strided_slice %0 {offsets = [3, 0], sizes = [1, 32], strides = [1, 1]} : vector<16x32xf32> to vector<1x32xf32>
    %cst_13 = arith.constant dense<0.000000e+00> : vector<5xf32>
    %31 = vector.multi_reduction <add>, %28, %cst_13 [1] : vector<5x32xf32> to vector<5xf32>
    %32 = vector.shape_cast %31 : vector<5xf32> to vector<5x1xf32>
    %cst_14 = arith.constant 3.200000e+01 : f32
    %33 = vector.broadcast %cst_14 : f32 to vector<5x1xf32>
    %34 = arith.divf %32, %33 : vector<5x1xf32>
    %35 = vector.broadcast %34 : vector<5x1xf32> to vector<5x32xf32>
    %36 = arith.subf %28, %35 : vector<5x32xf32>
    %37 = arith.mulf %36, %36 : vector<5x32xf32>
    %cst_15 = arith.constant dense<0.000000e+00> : vector<5xf32>
    %38 = vector.multi_reduction <add>, %37, %cst_15 [1] : vector<5x32xf32> to vector<5xf32>
    %39 = vector.shape_cast %38 : vector<5xf32> to vector<5x1xf32>
    %cst_16 = arith.constant 3.200000e+01 : f32
    %40 = vector.broadcast %cst_16 : f32 to vector<5x1xf32>
    %41 = arith.divf %39, %40 : vector<5x1xf32>
    %cst_17 = arith.constant 9.99999974E-6 : f32
    %42 = vector.broadcast %cst_17 : f32 to vector<5x1xf32>
    %43 = arith.addf %41, %42 : vector<5x1xf32>
    %44 = math.rsqrt %43 : vector<5x1xf32>
    %45 = vector.broadcast %44 : vector<5x1xf32> to vector<5x32xf32>
    %46 = arith.mulf %36, %45 : vector<5x32xf32>
    %47 = vector.broadcast %29 : vector<1x32xf32> to vector<5x32xf32>
    %48 = arith.mulf %46, %47 : vector<5x32xf32>
    %49 = vector.broadcast %30 : vector<1x32xf32> to vector<5x32xf32>
    %50 = arith.addf %48, %49 : vector<5x32xf32>
    %c0_18 = arith.constant 0 : index
    %c0_19 = arith.constant 0 : index
    %51 = vector.load %arg5[%c0_18, %c0_19] : memref<32x96xbf16, #tpu.memory_space<vmem>>, vector<32x96xbf16>
    %52 = arith.truncf %50 : vector<5x32xf32> to vector<5x32xbf16>
    %cst_20 = arith.constant dense<0.000000e+00> : vector<5x96xf32>
    %53 = tpu.matmul %52, %51, %cst_20 {dimension_numbers = #tpu.dot_dimension_numbers<[1], [0], [0], [1], [0, 0, 1, 1], [], []>} : vector<5x32xbf16>, vector<32x96xbf16>, vector<5x96xf32> -> vector<5x96xf32>
    %54 = vector.extract_strided_slice %53 {offsets = [0, 0], sizes = [5, 32], strides = [1, 1]} : vector<5x96xf32> to vector<5x32xf32>
    %55 = vector.extract_strided_slice %0 {offsets = [10, 0], sizes = [1, 32], strides = [1, 1]} : vector<16x32xf32> to vector<1x32xf32>
    %56 = vector.broadcast %55 : vector<1x32xf32> to vector<5x32xf32>
    %57 = arith.addf %54, %56 : vector<5x32xf32>
    %58 = vector.extract_strided_slice %53 {offsets = [0, 32], sizes = [5, 32], strides = [1, 1]} : vector<5x96xf32> to vector<5x32xf32>
    %59 = vector.extract_strided_slice %0 {offsets = [11, 0], sizes = [1, 32], strides = [1, 1]} : vector<16x32xf32> to vector<1x32xf32>
    %60 = vector.broadcast %59 : vector<1x32xf32> to vector<5x32xf32>
    %61 = arith.addf %58, %60 : vector<5x32xf32>
    %62 = vector.extract_strided_slice %53 {offsets = [0, 64], sizes = [5, 32], strides = [1, 1]} : vector<5x96xf32> to vector<5x32xf32>
    %63 = vector.extract_strided_slice %0 {offsets = [12, 0], sizes = [1, 32], strides = [1, 1]} : vector<16x32xf32> to vector<1x32xf32>
    %64 = vector.broadcast %63 : vector<1x32xf32> to vector<5x32xf32>
    %65 = arith.addf %62, %64 : vector<5x32xf32>
    %66 = vector.extract_strided_slice %57 {offsets = [0, 0], sizes = [5, 8], strides = [1, 1]} : vector<5x32xf32> to vector<5x8xf32>
    %67 = vector.extract_strided_slice %57 {offsets = [0, 8], sizes = [5, 8], strides = [1, 1]} : vector<5x32xf32> to vector<5x8xf32>
    %68 = vector.extract_strided_slice %57 {offsets = [0, 16], sizes = [5, 8], strides = [1, 1]} : vector<5x32xf32> to vector<5x8xf32>
    %69 = vector.extract_strided_slice %57 {offsets = [0, 24], sizes = [5, 8], strides = [1, 1]} : vector<5x32xf32> to vector<5x8xf32>
    %70 = vector.shape_cast %66 : vector<5x8xf32> to vector<1x5x8xf32>
    %71 = vector.shape_cast %67 : vector<5x8xf32> to vector<1x5x8xf32>
    %72 = vector.shape_cast %68 : vector<5x8xf32> to vector<1x5x8xf32>
    %73 = vector.shape_cast %69 : vector<5x8xf32> to vector<1x5x8xf32>
    %74 = tpu.concatenate %70, %71, %72, %73 in 0 : vector<1x5x8xf32>, vector<1x5x8xf32>, vector<1x5x8xf32>, vector<1x5x8xf32> -> vector<4x5x8xf32>
    %75 = arith.truncf %74 : vector<4x5x8xf32> to vector<4x5x8xbf16>
    %76 = vector.extract_strided_slice %61 {offsets = [0, 0], sizes = [5, 8], strides = [1, 1]} : vector<5x32xf32> to vector<5x8xf32>
    %77 = vector.extract_strided_slice %61 {offsets = [0, 8], sizes = [5, 8], strides = [1, 1]} : vector<5x32xf32> to vector<5x8xf32>
    %78 = vector.extract_strided_slice %61 {offsets = [0, 16], sizes = [5, 8], strides = [1, 1]} : vector<5x32xf32> to vector<5x8xf32>
    %79 = vector.extract_strided_slice %61 {offsets = [0, 24], sizes = [5, 8], strides = [1, 1]} : vector<5x32xf32> to vector<5x8xf32>
    %80 = vector.shape_cast %76 : vector<5x8xf32> to vector<1x5x8xf32>
    %81 = vector.shape_cast %77 : vector<5x8xf32> to vector<1x5x8xf32>
    %82 = vector.shape_cast %78 : vector<5x8xf32> to vector<1x5x8xf32>
    %83 = vector.shape_cast %79 : vector<5x8xf32> to vector<1x5x8xf32>
    %84 = tpu.concatenate %80, %81, %82, %83 in 0 : vector<1x5x8xf32>, vector<1x5x8xf32>, vector<1x5x8xf32>, vector<1x5x8xf32> -> vector<4x5x8xf32>
    %85 = arith.truncf %84 : vector<4x5x8xf32> to vector<4x5x8xbf16>
    %86 = vector.extract_strided_slice %65 {offsets = [0, 0], sizes = [5, 8], strides = [1, 1]} : vector<5x32xf32> to vector<5x8xf32>
    %87 = vector.extract_strided_slice %65 {offsets = [0, 8], sizes = [5, 8], strides = [1, 1]} : vector<5x32xf32> to vector<5x8xf32>
    %88 = vector.extract_strided_slice %65 {offsets = [0, 16], sizes = [5, 8], strides = [1, 1]} : vector<5x32xf32> to vector<5x8xf32>
    %89 = vector.extract_strided_slice %65 {offsets = [0, 24], sizes = [5, 8], strides = [1, 1]} : vector<5x32xf32> to vector<5x8xf32>
    %90 = vector.shape_cast %86 : vector<5x8xf32> to vector<1x5x8xf32>
    %91 = vector.shape_cast %87 : vector<5x8xf32> to vector<1x5x8xf32>
    %92 = vector.shape_cast %88 : vector<5x8xf32> to vector<1x5x8xf32>
    %93 = vector.shape_cast %89 : vector<5x8xf32> to vector<1x5x8xf32>
    %94 = tpu.concatenate %90, %91, %92, %93 in 0 : vector<1x5x8xf32>, vector<1x5x8xf32>, vector<1x5x8xf32>, vector<1x5x8xf32> -> vector<4x5x8xf32>
    %95 = arith.truncf %94 : vector<4x5x8xf32> to vector<4x5x8xbf16>
    "tpu.trace_start"() <{level = 10 : i32, message = "hqd,hkd->hqk"}> : () -> ()
    %cst_21 = arith.constant dense<0.000000e+00> : vector<4x5x5xf32>
    %96 = tpu.matmul %75, %85, %cst_21 {dimension_numbers = #tpu.dot_dimension_numbers<[2], [2], [1], [1], [0, 0, 0, 1, 1, 1], [0], [0]>} : vector<4x5x8xbf16>, vector<4x5x8xbf16>, vector<4x5x5xf32> -> vector<4x5x5xf32>
    "tpu.trace_stop"() : () -> ()
    %cst_22 = arith.constant 0.353553385 : f32
    %97 = vector.broadcast %cst_22 : f32 to vector<4x5x5xf32>
    %98 = arith.mulf %96, %97 : vector<4x5x5xf32>
    %cst_23 = arith.constant dense<0xFF800000> : vector<4x5xf32>
    %99 = vector.multi_reduction <maximumf>, %98, %cst_23 [2] : vector<4x5x5xf32> to vector<4x5xf32>
    %100 = vector.shape_cast %99 : vector<4x5xf32> to vector<4x5x1xf32>
    %101 = vector.broadcast %100 : vector<4x5x1xf32> to vector<4x5x5xf32>
    %102 = arith.subf %98, %101 : vector<4x5x5xf32>
    %103 = math.exp %102 : vector<4x5x5xf32>
    %cst_24 = arith.constant dense<0.000000e+00> : vector<4x5xf32>
    %104 = vector.multi_reduction <add>, %103, %cst_24 [2] : vector<4x5x5xf32> to vector<4x5xf32>
    %105 = vector.shape_cast %104 : vector<4x5xf32> to vector<4x5x1xf32>
    %106 = vector.broadcast %105 : vector<4x5x1xf32> to vector<4x5x5xf32>
    %107 = arith.divf %103, %106 : vector<4x5x5xf32>
    %108 = arith.truncf %107 : vector<4x5x5xf32> to vector<4x5x5xbf16>
    "tpu.trace_start"() <{level = 10 : i32, message = "hqk,hkd->hqd"}> : () -> ()
    %cst_25 = arith.constant dense<0.000000e+00> : vector<4x5x8xf32>
    %109 = tpu.matmul %108, %95, %cst_25 {dimension_numbers = #tpu.dot_dimension_numbers<[2], [1], [1], [2], [0, 0, 0, 1, 1, 2], [0], [0]>} : vector<4x5x5xbf16>, vector<4x5x8xbf16>, vector<4x5x8xf32> -> vector<4x5x8xf32>
    "tpu.trace_stop"() : () -> ()
    %110 = vector.extract_strided_slice %109 {offsets = [0, 0, 0], sizes = [1, 5, 8], strides = [1, 1, 1]} : vector<4x5x8xf32> to vector<1x5x8xf32>
    %111 = vector.shape_cast %110 : vector<1x5x8xf32> to vector<5x8xf32>
    %112 = vector.extract_strided_slice %109 {offsets = [1, 0, 0], sizes = [1, 5, 8], strides = [1, 1, 1]} : vector<4x5x8xf32> to vector<1x5x8xf32>
    %113 = vector.shape_cast %112 : vector<1x5x8xf32> to vector<5x8xf32>
    %114 = vector.extract_strided_slice %109 {offsets = [2, 0, 0], sizes = [1, 5, 8], strides = [1, 1, 1]} : vector<4x5x8xf32> to vector<1x5x8xf32>
    %115 = vector.shape_cast %114 : vector<1x5x8xf32> to vector<5x8xf32>
    %116 = vector.extract_strided_slice %109 {offsets = [3, 0, 0], sizes = [1, 5, 8], strides = [1, 1, 1]} : vector<4x5x8xf32> to vector<1x5x8xf32>
    %117 = vector.shape_cast %116 : vector<1x5x8xf32> to vector<5x8xf32>
    %118 = tpu.concatenate %111, %113, %115, %117 in 1 : vector<5x8xf32>, vector<5x8xf32>, vector<5x8xf32>, vector<5x8xf32> -> vector<5x32xf32>
    %c0_26 = arith.constant 0 : index
    %c0_27 = arith.constant 0 : index
    %119 = vector.load %arg6[%c0_26, %c0_27] : memref<32x32xbf16, #tpu.memory_space<vmem>>, vector<32x32xbf16>
    %120 = arith.truncf %118 : vector<5x32xf32> to vector<5x32xbf16>
    %cst_28 = arith.constant dense<0.000000e+00> : vector<5x32xf32>
    %121 = tpu.matmul %120, %119, %cst_28 {dimension_numbers = #tpu.dot_dimension_numbers<[1], [0], [0], [1], [0, 0, 1, 1], [], []>} : vector<5x32xbf16>, vector<32x32xbf16>, vector<5x32xf32> -> vector<5x32xf32>
    %122 = arith.addf %28, %121 : vector<5x32xf32>
    %123 = vector.extract_strided_slice %0 {offsets = [8, 0], sizes = [1, 32], strides = [1, 1]} : vector<16x32xf32> to vector<1x32xf32>
    %124 = vector.broadcast %123 : vector<1x32xf32> to vector<5x32xf32>
    %125 = arith.addf %122, %124 : vector<5x32xf32>
    %126 = vector.extract_strided_slice %0 {offsets = [4, 0], sizes = [1, 32], strides = [1, 1]} : vector<16x32xf32> to vector<1x32xf32>
    %127 = vector.extract_strided_slice %0 {offsets = [5, 0], sizes = [1, 32], strides = [1, 1]} : vector<16x32xf32> to vector<1x32xf32>
    %cst_29 = arith.constant dense<0.000000e+00> : vector<5xf32>
    %128 = vector.multi_reduction <add>, %125, %cst_29 [1] : vector<5x32xf32> to vector<5xf32>
    %129 = vector.shape_cast %128 : vector<5xf32> to vector<5x1xf32>
    %cst_30 = arith.constant 3.200000e+01 : f32
    %130 = vector.broadcast %cst_30 : f32 to vector<5x1xf32>
    %131 = arith.divf %129, %130 : vector<5x1xf32>
    %132 = vector.broadcast %131 : vector<5x1xf32> to vector<5x32xf32>
    %133 = arith.subf %125, %132 : vector<5x32xf32>
    %134 = arith.mulf %133, %133 : vector<5x32xf32>
    %cst_31 = arith.constant dense<0.000000e+00> : vector<5xf32>
    %135 = vector.multi_reduction <add>, %134, %cst_31 [1] : vector<5x32xf32> to vector<5xf32>
    %136 = vector.shape_cast %135 : vector<5xf32> to vector<5x1xf32>
    %cst_32 = arith.constant 3.200000e+01 : f32
    %137 = vector.broadcast %cst_32 : f32 to vector<5x1xf32>
    %138 = arith.divf %136, %137 : vector<5x1xf32>
    %cst_33 = arith.constant 9.99999974E-6 : f32
    %139 = vector.broadcast %cst_33 : f32 to vector<5x1xf32>
    %140 = arith.addf %138, %139 : vector<5x1xf32>
    %141 = math.rsqrt %140 : vector<5x1xf32>
    %142 = vector.broadcast %141 : vector<5x1xf32> to vector<5x32xf32>
    %143 = arith.mulf %133, %142 : vector<5x32xf32>
    %144 = vector.broadcast %126 : vector<1x32xf32> to vector<5x32xf32>
    %145 = arith.mulf %143, %144 : vector<5x32xf32>
    %146 = vector.broadcast %127 : vector<1x32xf32> to vector<5x32xf32>
    %147 = arith.addf %145, %146 : vector<5x32xf32>
    %c0_34 = arith.constant 0 : index
    %c0_35 = arith.constant 0 : index
    %148 = vector.load %arg7[%c0_34, %c0_35] : memref<32x128xbf16, #tpu.memory_space<vmem>>, vector<32x128xbf16>
    %149 = arith.truncf %147 : vector<5x32xf32> to vector<5x32xbf16>
    %cst_36 = arith.constant dense<0.000000e+00> : vector<5x128xf32>
    %150 = tpu.matmul %149, %148, %cst_36 {dimension_numbers = #tpu.dot_dimension_numbers<[1], [0], [0], [1], [0, 0, 1, 1], [], []>} : vector<5x32xbf16>, vector<32x128xbf16>, vector<5x128xf32> -> vector<5x128xf32>
    %c0_37 = arith.constant 0 : index
    %c0_38 = arith.constant 0 : index
    %151 = vector.load %arg8[%c0_37, %c0_38] : memref<1x128xf32, #tpu.memory_space<vmem>>, vector<1x128xf32>
    %152 = vector.broadcast %151 : vector<1x128xf32> to vector<5x128xf32>
    %153 = arith.addf %150, %152 : vector<5x128xf32>
    %cst_39 = arith.constant 1.702000e+00 : f32
    %154 = vector.broadcast %cst_39 : f32 to vector<5x128xf32>
    %155 = arith.mulf %154, %153 : vector<5x128xf32>
    %156 = arith.negf %155 : vector<5x128xf32>
    %157 = math.exp %156 : vector<5x128xf32>
    %cst_40 = arith.constant 1.000000e+00 : f32
    %158 = vector.broadcast %cst_40 : f32 to vector<5x128xf32>
    %159 = arith.addf %158, %157 : vector<5x128xf32>
    %160 = arith.divf %158, %159 : vector<5x128xf32>
    %161 = arith.mulf %153, %160 : vector<5x128xf32>
    %c0_41 = arith.constant 0 : index
    %c0_42 = arith.constant 0 : index
    %162 = vector.load %arg9[%c0_41, %c0_42] : memref<128x32xbf16, #tpu.memory_space<vmem>>, vector<128x32xbf16>
    %163 = arith.truncf %161 : vector<5x128xf32> to vector<5x128xbf16>
    %cst_43 = arith.constant dense<0.000000e+00> : vector<5x32xf32>
    %164 = tpu.matmul %163, %162, %cst_43 {dimension_numbers = #tpu.dot_dimension_numbers<[1], [0], [0], [1], [0, 0, 1, 1], [], []>} : vector<5x128xbf16>, vector<128x32xbf16>, vector<5x32xf32> -> vector<5x32xf32>
    %165 = arith.addf %125, %164 : vector<5x32xf32>
    %166 = vector.extract_strided_slice %0 {offsets = [9, 0], sizes = [1, 32], strides = [1, 1]} : vector<16x32xf32> to vector<1x32xf32>
    %167 = vector.broadcast %166 : vector<1x32xf32> to vector<5x32xf32>
    %168 = arith.addf %165, %167 : vector<5x32xf32>
    %169 = vector.extract_strided_slice %168 {offsets = [0, 0], sizes = [1, 32], strides = [1, 1]} : vector<5x32xf32> to vector<1x32xf32>
    %170 = vector.extract_strided_slice %0 {offsets = [6, 0], sizes = [1, 32], strides = [1, 1]} : vector<16x32xf32> to vector<1x32xf32>
    %171 = vector.extract_strided_slice %0 {offsets = [7, 0], sizes = [1, 32], strides = [1, 1]} : vector<16x32xf32> to vector<1x32xf32>
    %cst_44 = arith.constant dense<0.000000e+00> : vector<1xf32>
    %172 = vector.multi_reduction <add>, %169, %cst_44 [1] : vector<1x32xf32> to vector<1xf32>
    %173 = vector.shape_cast %172 : vector<1xf32> to vector<1x1xf32>
    %cst_45 = arith.constant 3.200000e+01 : f32
    %174 = vector.broadcast %cst_45 : f32 to vector<1x1xf32>
    %175 = arith.divf %173, %174 : vector<1x1xf32>
    %176 = vector.broadcast %175 : vector<1x1xf32> to vector<1x32xf32>
    %177 = arith.subf %169, %176 : vector<1x32xf32>
    %178 = arith.mulf %177, %177 : vector<1x32xf32>
    %cst_46 = arith.constant dense<0.000000e+00> : vector<1xf32>
    %179 = vector.multi_reduction <add>, %178, %cst_46 [1] : vector<1x32xf32> to vector<1xf32>
    %180 = vector.shape_cast %179 : vector<1xf32> to vector<1x1xf32>
    %cst_47 = arith.constant 3.200000e+01 : f32
    %181 = vector.broadcast %cst_47 : f32 to vector<1x1xf32>
    %182 = arith.divf %180, %181 : vector<1x1xf32>
    %cst_48 = arith.constant 9.99999974E-6 : f32
    %183 = vector.broadcast %cst_48 : f32 to vector<1x1xf32>
    %184 = arith.addf %182, %183 : vector<1x1xf32>
    %185 = math.rsqrt %184 : vector<1x1xf32>
    %186 = vector.broadcast %185 : vector<1x1xf32> to vector<1x32xf32>
    %187 = arith.mulf %177, %186 : vector<1x32xf32>
    %188 = arith.mulf %187, %170 : vector<1x32xf32>
    %189 = arith.addf %188, %171 : vector<1x32xf32>
    %c0_49 = arith.constant 0 : index
    %c0_50 = arith.constant 0 : index
    %190 = vector.load %arg10[%c0_49, %c0_50] : memref<32x16xbf16, #tpu.memory_space<vmem>>, vector<32x16xbf16>
    %191 = arith.truncf %189 : vector<1x32xf32> to vector<1x32xbf16>
    %cst_51 = arith.constant dense<0.000000e+00> : vector<1x16xf32>
    %192 = tpu.matmul %191, %190, %cst_51 {dimension_numbers = #tpu.dot_dimension_numbers<[1], [0], [0], [1], [0, 0, 1, 1], [], []>} : vector<1x32xbf16>, vector<32x16xbf16>, vector<1x16xf32> -> vector<1x16xf32>
    %193 = arith.mulf %192, %192 : vector<1x16xf32>
    %cst_52 = arith.constant dense<0.000000e+00> : vector<1xf32>
    %194 = vector.multi_reduction <add>, %193, %cst_52 [1] : vector<1x16xf32> to vector<1xf32>
    %195 = vector.shape_cast %194 : vector<1xf32> to vector<1x1xf32>
    %cst_53 = arith.constant 1.000000e-24 : f32
    %196 = vector.broadcast %cst_53 : f32 to vector<1x1xf32>
    %197 = arith.maximumf %195, %196 : vector<1x1xf32>
    %198 = math.rsqrt %197 : vector<1x1xf32>
    %199 = vector.broadcast %198 : vector<1x1xf32> to vector<1x16xf32>
    %200 = arith.mulf %192, %199 : vector<1x16xf32>
    %c0_54 = arith.constant 0 : index
    %c0_55 = arith.constant 0 : index
    %c0_56 = arith.constant 0 : index
    %201 = vector.load %arg11[%c0_54, %c0_55, %c0_56] : memref<1x1x16xf32, #tpu.memory_space<vmem>>, vector<1x1x16xf32>
    %202 = vector.shape_cast %201 : vector<1x1x16xf32> to vector<1x16xf32>
    %203 = vector.shape_cast %200 : vector<1x16xf32> to vector<1x1x16xf32>
    tpu.vector_store %arg11[%c0_54, %c0_55, %c0_56], %203 {strides = array<i32>} : memref<1x1x16xf32, #tpu.memory_space<vmem>>, vector<1x1x16xf32>,
    return
  }
  func.func @transform_0(%arg0: i32) -> (i32, i32, i32) {
    %c0_i32 = arith.constant 0 : i32
    %c0_i32_0 = arith.constant 0 : i32
    %c0_i32_1 = arith.constant 0 : i32
    return %arg0, %c0_i32, %c0_i32_0 : i32, i32, i32
  }
  func.func @transform_1(%arg0: i32) -> (i32, i32) {
    %c0_i32 = arith.constant 0 : i32
    %c0_i32_0 = arith.constant 0 : i32
    %c0_i32_1 = arith.constant 0 : i32
    return %c0_i32, %c0_i32_0 : i32, i32
  }
  func.func @transform_2(%arg0: i32) -> (i32, i32) {
    %c0_i32 = arith.constant 0 : i32
    %c0_i32_0 = arith.constant 0 : i32
    %c0_i32_1 = arith.constant 0 : i32
    return %c0_i32, %c0_i32_0 : i32, i32
  }
  func.func @transform_3(%arg0: i32) -> (i32, i32) {
    %c0_i32 = arith.constant 0 : i32
    %c0_i32_0 = arith.constant 0 : i32
    %c0_i32_1 = arith.constant 0 : i32
    return %c0_i32, %c0_i32_0 : i32, i32
  }
  func.func @transform_4(%arg0: i32) -> (i32, i32) {
    %c0_i32 = arith.constant 0 : i32
    %c0_i32_0 = arith.constant 0 : i32
    %c0_i32_1 = arith.constant 0 : i32
    return %c0_i32, %c0_i32_0 : i32, i32
  }
  func.func @transform_5(%arg0: i32) -> (i32, i32) {
    %c0_i32 = arith.constant 0 : i32
    %c0_i32_0 = arith.constant 0 : i32
    %c0_i32_1 = arith.constant 0 : i32
    return %c0_i32, %c0_i32_0 : i32, i32
  }
  func.func @transform_6(%arg0: i32) -> (i32, i32) {
    %c0_i32 = arith.constant 0 : i32
    %c0_i32_0 = arith.constant 0 : i32
    %c0_i32_1 = arith.constant 0 : i32
    return %c0_i32, %c0_i32_0 : i32, i32
  }
  func.func @transform_7(%arg0: i32) -> (i32, i32) {
    %c0_i32 = arith.constant 0 : i32
    %c0_i32_0 = arith.constant 0 : i32
    %c0_i32_1 = arith.constant 0 : i32
    return %c0_i32, %c0_i32_0 : i32, i32
  }
  func.func @transform_8(%arg0: i32) -> (i32, i32) {
    %c0_i32 = arith.constant 0 : i32
    %c0_i32_0 = arith.constant 0 : i32
    %c0_i32_1 = arith.constant 0 : i32
    return %c0_i32, %c0_i32_0 : i32, i32
  }
  func.func @transform_9(%arg0: i32) -> (i32, i32) {
    %c0_i32 = arith.constant 0 : i32
    %c0_i32_0 = arith.constant 0 : i32
    %c0_i32_1 = arith.constant 0 : i32
    return %c0_i32, %c0_i32_0 : i32, i32
  }
  func.func @transform_10(%arg0: i32) -> (i32, i32, i32) {
    %c0_i32 = arith.constant 0 : i32
    %c0_i32_0 = arith.constant 0 : i32
    %c0_i32_1 = arith.constant 0 : i32
    return %arg0, %c0_i32, %c0_i32_0 : i32, i32, i32
  }
}

</mosaic_0001>

<llo_original>
// kernel: tpu_custom_call.1
$region0: #{tpu_custom_call.1}
  #allocation0 [shape = 'u32[]', space=smem, size = 0x4, offset = 0x4, fixed_abs, tag = 'smem constant byte address 0x4 - core index']
  #allocation1 [shape = 'u32[144,128]{1,0:T(1,128)}', space=vmem, size = 0x12000, scoped, tag = 'internal scratch']
  %s0 = inlined_call_operand.vmem [shape: bf16[2,5,192], index: 0, kind: input, shape index: {}]
  %s1 = inlined_call_operand.vmem [shape: f32[5,32], index: 1, kind: input, shape index: {}]
  %s2 = inlined_call_operand.vmem [shape: bf16[192,32], index: 2, kind: input, shape index: {}]
  %s3 = inlined_call_operand.vmem [shape: f32[16,32], index: 3, kind: input, shape index: {}]
  %s4 = inlined_call_operand.vmem [shape: bf16[32,96], index: 4, kind: input, shape index: {}]
  %s5 = inlined_call_operand.vmem [shape: bf16[32,32], index: 5, kind: input, shape index: {}]
  %s6 = inlined_call_operand.vmem [shape: bf16[32,128], index: 6, kind: input, shape index: {}]
  %s7 = inlined_call_operand.vmem [shape: f32[1,128], index: 7, kind: input, shape index: {}]
  %s8 = inlined_call_operand.vmem [shape: bf16[128,32], index: 8, kind: input, shape index: {}]
  %s9 = inlined_call_operand.vmem [shape: bf16[32,16], index: 9, kind: input, shape index: {}]
  %s10 = inlined_call_operand.hbm [shape: f32[2,1,16], index: 10, kind: output, shape index: {}]
  %s11 = sld [smem:[#allocation0]]
  $region73: #{tpu_custom_call.1} parent=0
    _
  %s13 = ssub.s32 1, %s11
  %s14 = scalar_select 0, %s13, %s11
  $region1: #{tpu_custom_call.1} parent=0
    #allocation2 [shape = 'u8[1024]{0}', space=vmem, size = 0x400, scoped, tag = 'output window, operand 0']
    #allocation3 [shape = 's32[2]{0}', space=sflag, size = 0x8, scoped, tag = 'scoped memory for tpu_custom_call.1']
    %15 = vsyncpa [#allocation3], 0
    %s16 = scalar_lea.sflag [#allocation3], 1
    %17 = vsyncpa %s16, 0
    loop: start=0, step=1, limit=4
    $region2: #{tpu_custom_call.1} parent=1 // loop_pre_header
      _
    $region3: #{tpu_custom_call.1} parent=1 // loop_header
      %s19 = sphi 0, %s23
      %p20 = scmp.ge.s32.totalorder %s19, 4
      %s29 = sphi 0, %s31
      %s32 = sphi 0, %s29
      %s33 = sphi 0, %s32
      %s49 = sphi 0, %s33
      %s53 = sphi 0, %s53
      %s55 = sphi 0, %s53
      %s56 = sphi 0, %s55
      %s70 = sphi 0, %s56
      %s74 = sphi 0, %s74
      %s76 = sphi 0, %s74
      %s77 = sphi 0, %s76
      %s91 = sphi 0, %s77
      %s95 = sphi 0, %s95
      %s97 = sphi 0, %s95
      %s98 = sphi 0, %s97
      %s112 = sphi 0, %s98
      %s116 = sphi 0, %s116
      %s118 = sphi 0, %s116
      %s119 = sphi 0, %s118
      %s133 = sphi 0, %s119
      %s137 = sphi 0, %s137
      %s139 = sphi 0, %s137
      %s140 = sphi 0, %s139
      %s154 = sphi 0, %s140
      %s158 = sphi 0, %s158
      %s160 = sphi 0, %s158
      %s161 = sphi 0, %s160
      %s175 = sphi 0, %s161
      %s179 = sphi 0, %s179
      %s181 = sphi 0, %s179
      %s182 = sphi 0, %s181
      %s196 = sphi 0, %s182
      %s200 = sphi 0, %s200
      %s202 = sphi 0, %s200
      %s203 = sphi 0, %s202
      %s217 = sphi 0, %s203
      %s221 = sphi 0, %s221
      %s223 = sphi 0, %s221
      %s224 = sphi 0, %s223
      %s238 = sphi 0, %s224
      %s244 = sphi 0, %s246
      %s247 = sphi 0, %s244
      %s248 = sphi 0, %s247
      %s264 = sphi 0, %s248
    $region4: #{tpu_custom_call.1} parent=1 // loop_header_branch
      %22 = sbr.rel (%p20) target = $region8
    $region5: #{tpu_custom_call.1} parent=1 // loop_body
      %s24 = ssub.s32 %s19, 1
      %s25 = ssub.s32 %s19, 2
      %s26 = sadd.s32 %s19, 1
      %s27 = ssub.s32 %s19, %s26
      %p28 = scmp.eq.s32.totalorder %s27, 0
      %s30 = sadd.s32 %s29, 1
      %s31 = scalar_select %p28, %s29, %s30
      %p34 = pneg %p28
      %p35 = scmp.eq.s32.totalorder %s19, 1
      %p36 = por %p34, %p35
      %p37 = scmp.ne.s32.totalorder %s29, %s32
      %p38 = scmp.eq.s32.totalorder %s19, 0
      %p39 = por %p37, %p38
      %p40 = scmp.ne.s32.totalorder %s29, %s32
      %p41 = scmp.eq.s32.totalorder %s24, 1
      %p42 = por %p40, %p41
      %p43 = scmp.ne.s32.totalorder %s32, %s33
      %p44 = scmp.eq.s32.totalorder %s24, 0
      %p45 = por %p43, %p44
      %p46 = scmp.ne.s32.totalorder %s32, %s33
      %p47 = scmp.eq.s32.totalorder %s25, 1
      %p48 = por %p46, %p47
      %p50 = scmp.ne.s32.totalorder %s33, %s49
      %p51 = scmp.eq.s32.totalorder %s25, 0
      %p52 = por %p50, %p51
      %s54 = sadd.s32 %s53, 1
      %p57 = scmp.eq.s32.totalorder %s19, 1
      %p58 = scmp.ne.s32.totalorder %s53, %s55
      %p59 = scmp.eq.s32.totalorder %s19, 0
      %p60 = por %p58, %p59
      %p61 = scmp.ne.s32.totalorder %s53, %s55
      %p62 = scmp.eq.s32.totalorder %s24, 1
      %p63 = por %p61, %p62
      %p64 = scmp.ne.s32.totalorder %s55, %s56
      %p65 = scmp.eq.s32.totalorder %s24, 0
      %p66 = por %p64, %p65
      %p67 = scmp.ne.s32.totalorder %s55, %s56
      %p68 = scmp.eq.s32.totalorder %s25, 1
      %p69 = por %p67, %p68
      %p71 = scmp.ne.s32.totalorder %s56, %s70
      %p72 = scmp.eq.s32.totalorder %s25, 0
      %p73 = por %p71, %p72
      %s75 = sadd.s32 %s74, 1
      %p78 = scmp.eq.s32.totalorder %s19, 1
      %p79 = scmp.ne.s32.totalorder %s74, %s76
      %p80 = scmp.eq.s32.totalorder %s19, 0
      %p81 = por %p79, %p80
      %p82 = scmp.ne.s32.totalorder %s74, %s76
      %p83 = scmp.eq.s32.totalorder %s24, 1
      %p84 = por %p82, %p83
      %p85 = scmp.ne.s32.totalorder %s76, %s77
      %p86 = scmp.eq.s32.totalorder %s24, 0
      %p87 = por %p85, %p86
      %p88 = scmp.ne.s32.totalorder %s76, %s77
      %p89 = scmp.eq.s32.totalorder %s25, 1
      %p90 = por %p88, %p89
      %p92 = scmp.ne.s32.totalorder %s77, %s91
      %p93 = scmp.eq.s32.totalorder %s25, 0
      %p94 = por %p92, %p93
      %s96 = sadd.s32 %s95, 1
      %p99 = scmp.eq.s32.totalorder %s19, 1
      %p100 = scmp.ne.s32.totalorder %s95, %s97
      %p101 = scmp.eq.s32.totalorder %s19, 0
      %p102 = por %p100, %p101
      %p103 = scmp.ne.s32.totalorder %s95, %s97
      %p104 = scmp.eq.s32.totalorder %s24, 1
      %p105 = por %p103, %p104
      %p106 = scmp.ne.s32.totalorder %s97, %s98
      %p107 = scmp.eq.s32.totalorder %s24, 0
      %p108 = por %p106, %p107
      %p109 = scmp.ne.s32.totalorder %s97, %s98
      %p110 = scmp.eq.s32.totalorder %s25, 1
      %p111 = por %p109, %p110
      %p113 = scmp.ne.s32.totalorder %s98, %s112
      %p114 = scmp.eq.s32.totalorder %s25, 0
      %p115 = por %p113, %p114
      %s117 = sadd.s32 %s116, 1
      %p120 = scmp.eq.s32.totalorder %s19, 1
      %p121 = scmp.ne.s32.totalorder %s116, %s118
      %p122 = scmp.eq.s32.totalorder %s19, 0
      %p123 = por %p121, %p122
      %p124 = scmp.ne.s32.totalorder %s116, %s118
      %p125 = scmp.eq.s32.totalorder %s24, 1
      %p126 = por %p124, %p125
      %p127 = scmp.ne.s32.totalorder %s118, %s119
      %p128 = scmp.eq.s32.totalorder %s24, 0
      %p129 = por %p127, %p128
      %p130 = scmp.ne.s32.totalorder %s118, %s119
      %p131 = scmp.eq.s32.totalorder %s25, 1
      %p132 = por %p130, %p131
      %p134 = scmp.ne.s32.totalorder %s119, %s133
      %p135 = scmp.eq.s32.totalorder %s25, 0
      %p136 = por %p134, %p135
      %s138 = sadd.s32 %s137, 1
      %p141 = scmp.eq.s32.totalorder %s19, 1
      %p142 = scmp.ne.s32.totalorder %s137, %s139
      %p143 = scmp.eq.s32.totalorder %s19, 0
      %p144 = por %p142, %p143
      %p145 = scmp.ne.s32.totalorder %s137, %s139
      %p146 = scmp.eq.s32.totalorder %s24, 1
      %p147 = por %p145, %p146
      %p148 = scmp.ne.s32.totalorder %s139, %s140
      %p149 = scmp.eq.s32.totalorder %s24, 0
      %p150 = por %p148, %p149
      %p151 = scmp.ne.s32.totalorder %s139, %s140
      %p152 = scmp.eq.s32.totalorder %s25, 1
      %p153 = por %p151, %p152
      %p155 = scmp.ne.s32.totalorder %s140, %s154
      %p156 = scmp.eq.s32.totalorder %s25, 0
      %p157 = por %p155, %p156
      %s159 = sadd.s32 %s158, 1
      %p162 = scmp.eq.s32.totalorder %s19, 1
      %p163 = scmp.ne.s32.totalorder %s158, %s160
      %p164 = scmp.eq.s32.totalorder %s19, 0
      %p165 = por %p163, %p164
      %p166 = scmp.ne.s32.totalorder %s158, %s160
      %p167 = scmp.eq.s32.totalorder %s24, 1
      %p168 = por %p166, %p167
      %p169 = scmp.ne.s32.totalorder %s160, %s161
      %p170 = scmp.eq.s32.totalorder %s24, 0
      %p171 = por %p169, %p170
      %p172 = scmp.ne.s32.totalorder %s160, %s161
      %p173 = scmp.eq.s32.totalorder %s25, 1
      %p174 = por %p172, %p173
      %p176 = scmp.ne.s32.totalorder %s161, %s175
      %p177 = scmp.eq.s32.totalorder %s25, 0
      %p178 = por %p176, %p177
      %s180 = sadd.s32 %s179, 1
      %p183 = scmp.eq.s32.totalorder %s19, 1
      %p184 = scmp.ne.s32.totalorder %s179, %s181
      %p185 = scmp.eq.s32.totalorder %s19, 0
      %p186 = por %p184, %p185
      %p187 = scmp.ne.s32.totalorder %s179, %s181
      %p188 = scmp.eq.s32.totalorder %s24, 1
      %p189 = por %p187, %p188
      %p190 = scmp.ne.s32.totalorder %s181, %s182
      %p191 = scmp.eq.s32.totalorder %s24, 0
      %p192 = por %p190, %p191
      %p193 = scmp.ne.s32.totalorder %s181, %s182
      %p194 = scmp.eq.s32.totalorder %s25, 1
      %p195 = por %p193, %p194
      %p197 = scmp.ne.s32.totalorder %s182, %s196
      %p198 = scmp.eq.s32.totalorder %s25, 0
      %p199 = por %p197, %p198
      %s201 = sadd.s32 %s200, 1
      %p204 = scmp.eq.s32.totalorder %s19, 1
      %p205 = scmp.ne.s32.totalorder %s200, %s202
      %p206 = scmp.eq.s32.totalorder %s19, 0
      %p207 = por %p205, %p206
      %p208 = scmp.ne.s32.totalorder %s200, %s202
      %p209 = scmp.eq.s32.totalorder %s24, 1
      %p210 = por %p208, %p209
      %p211 = scmp.ne.s32.totalorder %s202, %s203
      %p212 = scmp.eq.s32.totalorder %s24, 0
      %p213 = por %p211, %p212
      %p214 = scmp.ne.s32.totalorder %s202, %s203
      %p215 = scmp.eq.s32.totalorder %s25, 1
      %p216 = por %p214, %p215
      %p218 = scmp.ne.s32.totalorder %s203, %s217
      %p219 = scmp.eq.s32.totalorder %s25, 0
      %p220 = por %p218, %p219
      %s222 = sadd.s32 %s221, 1
      %p225 = scmp.eq.s32.totalorder %s19, 1
      %p226 = scmp.ne.s32.totalorder %s221, %s223
      %p227 = scmp.eq.s32.totalorder %s19, 0
      %p228 = por %p226, %p227
      %p229 = scmp.ne.s32.totalorder %s221, %s223
      %p230 = scmp.eq.s32.totalorder %s24, 1
      %p231 = por %p229, %p230
      %p232 = scmp.ne.s32.totalorder %s223, %s224
      %p233 = scmp.eq.s32.totalorder %s24, 0
      %p234 = por %p232, %p233
      %p235 = scmp.ne.s32.totalorder %s223, %s224
      %p236 = scmp.eq.s32.totalorder %s25, 1
      %p237 = por %p235, %p236
      %p239 = scmp.ne.s32.totalorder %s224, %s238
      %p240 = scmp.eq.s32.totalorder %s25, 0
      %p241 = por %p239, %p240
      %s242 = ssub.s32 %s19, %s26
      %p243 = scmp.eq.s32.totalorder %s242, 0
      %s245 = sadd.s32 %s244, 1
      %s246 = scalar_select %p243, %s244, %s245
      %p249 = pneg %p243
      %p250 = scmp.eq.s32.totalorder %s19, 1
      %p251 = por %p249, %p250
      %p252 = scmp.ne.s32.totalorder %s244, %s247
      %p253 = scmp.eq.s32.totalorder %s19, 0
      %p254 = por %p252, %p253
      %p255 = scmp.ne.s32.totalorder %s244, %s247
      %p256 = scmp.eq.s32.totalorder %s24, 1
      %p257 = por %p255, %p256
      %p258 = scmp.ne.s32.totalorder %s247, %s248
      %p259 = scmp.eq.s32.totalorder %s24, 0
      %p260 = por %p258, %p259
      %p261 = scmp.ne.s32.totalorder %s247, %s248
      %p262 = scmp.eq.s32.totalorder %s25, 1
      %p263 = por %p261, %p262
      %p265 = scmp.ne.s32.totalorder %s248, %s264
      %p266 = scmp.eq.s32.totalorder %s25, 0
      %p267 = por %p265, %p266
      %p268 = scmp.le.s32.totalorder 1, %s19
      %p269 = scmp.lt.s32.totalorder %s19, 3
      %p270 = pnand %p268, %p269
      %p271 = pneg %p270
      // Predicated region
      $region9: #{tpu_custom_call.1} parent=5 // pred_check
        _
      $region10: #{tpu_custom_call.1} parent=5 // pred_check_branch
        %273 = sbr.rel (%p270) target = $region12
      $region11: #{tpu_custom_call.1} parent=5 // pred_region
        %s274 = ssub.s32 %s19, 1
        // Predicated region
        $region13: #{tpu_custom_call.1} parent=11 // pred_check
          %p275 = pneg %p66
        $region14: #{tpu_custom_call.1} parent=11 // pred_check_branch
          %277 = sbr.rel (%p275) target = $region16
        $region15: #{tpu_custom_call.1} parent=11 // pred_region
          _
        $region16: #{tpu_custom_call.1} parent=11 // pred_fallthru
          _
        // Predicated region
        $region17: #{tpu_custom_call.1} parent=11 // pred_check
          %p278 = pneg %p87
        $region18: #{tpu_custom_call.1} parent=11 // pred_check_branch
          %280 = sbr.rel (%p278) target = $region20
        $region19: #{tpu_custom_call.1} parent=11 // pred_region
          _
        $region20: #{tpu_custom_call.1} parent=11 // pred_fallthru
          _
        // Predicated region
        $region21: #{tpu_custom_call.1} parent=11 // pred_check
          %p281 = pneg %p108
        $region22: #{tpu_custom_call.1} parent=11 // pred_check_branch
          %283 = sbr.rel (%p281) target = $region24
        $region23: #{tpu_custom_call.1} parent=11 // pred_region
          _
        $region24: #{tpu_custom_call.1} parent=11 // pred_fallthru
          _
        // Predicated region
        $region25: #{tpu_custom_call.1} parent=11 // pred_check
          %p284 = pneg %p129
        $region26: #{tpu_custom_call.1} parent=11 // pred_check_branch
          %286 = sbr.rel (%p284) target = $region28
        $region27: #{tpu_custom_call.1} parent=11 // pred_region
          _
        $region28: #{tpu_custom_call.1} parent=11 // pred_fallthru
          _
        // Predicated region
        $region29: #{tpu_custom_call.1} parent=11 // pred_check
          %p287 = pneg %p150
        $region30: #{tpu_custom_call.1} parent=11 // pred_check_branch
          %289 = sbr.rel (%p287) target = $region32
        $region31: #{tpu_custom_call.1} parent=11 // pred_region
          _
        $region32: #{tpu_custom_call.1} parent=11 // pred_fallthru
          _
        // Predicated region
        $region33: #{tpu_custom_call.1} parent=11 // pred_check
          %p290 = pneg %p171
        $region34: #{tpu_custom_call.1} parent=11 // pred_check_branch
          %292 = sbr.rel (%p290) target = $region36
        $region35: #{tpu_custom_call.1} parent=11 // pred_region
          _
        $region36: #{tpu_custom_call.1} parent=11 // pred_fallthru
          _
        // Predicated region
        $region37: #{tpu_custom_call.1} parent=11 // pred_check
          %p293 = pneg %p192
        $region38: #{tpu_custom_call.1} parent=11 // pred_check_branch
          %295 = sbr.rel (%p293) target = $region40
        $region39: #{tpu_custom_call.1} parent=11 // pred_region
          _
        $region40: #{tpu_custom_call.1} parent=11 // pred_fallthru
          _
        // Predicated region
        $region41: #{tpu_custom_call.1} parent=11 // pred_check
          %p296 = pneg %p213
        $region42: #{tpu_custom_call.1} parent=11 // pred_check_branch
          %298 = sbr.rel (%p296) target = $region44
        $region43: #{tpu_custom_call.1} parent=11 // pred_region
          _
        $region44: #{tpu_custom_call.1} parent=11 // pred_fallthru
          _
        // Predicated region
        $region45: #{tpu_custom_call.1} parent=11 // pred_check
          %p299 = pneg %p234
        $region46: #{tpu_custom_call.1} parent=11 // pred_check_branch
          %301 = sbr.rel (%p299) target = $region48
        $region47: #{tpu_custom_call.1} parent=11 // pred_region
          _
        $region48: #{tpu_custom_call.1} parent=11 // pred_fallthru
          _
      $region12: #{tpu_custom_call.1} parent=5 // pred_fallthru
        _
      %p302 = scmp.lt.s32.totalorder %s19, 2
      // Predicated region
      $region49: #{tpu_custom_call.1} parent=5 // pred_check
        %p303 = pneg %p302
      $region50: #{tpu_custom_call.1} parent=5 // pred_check_branch
        %305 = sbr.rel (%p303) target = $region52
      $region51: #{tpu_custom_call.1} parent=5 // pred_region
        // Predicated region
        $region53: #{tpu_custom_call.1} parent=51 // pred_check
          %p306 = pneg %p39
        $region54: #{tpu_custom_call.1} parent=51 // pred_check_branch
          %308 = sbr.rel (%p306) target = $region56
        $region55: #{tpu_custom_call.1} parent=51 // pred_region
          %p309 = scmp.lt.s32.totalorder %s19, 1
          %s310 = scalar_select %p309, %s19, 1
          %s311 = smul.addr %s310, 2
          %s312 = smul.addr %s311, 4
          %s313 = scalar_lea.vmem %s0, %s312
        $region56: #{tpu_custom_call.1} parent=51 // pred_fallthru
          _
      $region52: #{tpu_custom_call.1} parent=5 // pred_fallthru
        _
      %p314 = scmp.le.s32.totalorder 1, %s19
      %p315 = scmp.lt.s32.totalorder %s19, 3
      %p316 = pnand %p314, %p315
      %p317 = pneg %p316
      // Predicated region
      $region57: #{tpu_custom_call.1} parent=5 // pred_check
        _
      $region58: #{tpu_custom_call.1} parent=5 // pred_check_branch
        %319 = sbr.rel (%p316) target = $region60
      $region59: #{tpu_custom_call.1} parent=5 // pred_region
        %s320 = ssub.s32 %s19, 1
        %p321 = scmp.lt.s32.totalorder %s24, 1
        %s322 = scalar_select %p321, %s24, 1
        %s323 = smul.addr %s322, 2
        %s324 = smul.addr %s323, 4
        %s325 = scalar_lea.vmem %s0, %s324
        %p326 = pneg %p45
        %p327 = pneg %p42
        %p328 = pneg %p66
        %p329 = pneg %p63
        %p330 = pneg %p87
        %p331 = pneg %p84
        %p332 = pneg %p108
        %p333 = pneg %p105
        %p334 = pneg %p129
        %p335 = pneg %p126
        %p336 = pneg %p150
        %p337 = pneg %p147
        %p338 = pneg %p171
        %p339 = pneg %p168
        %p340 = pneg %p192
        %p341 = pneg %p189
        %p342 = pneg %p213
        %p343 = pneg %p210
        %p344 = pneg %p234
        %p345 = pneg %p231
        %p346 = pneg %p260
        %p347 = pneg %p257
        %s348 = sand.u32 %s247, 1
        %s349 = scalar_lea.sflag [#allocation3], %s348
        %s350 = sand.u32 %s247, 1
        %s351 = scalar_lea.vmem [#allocation2], %s350
        %p352 = scmp.lt.s32.totalorder %s24, 1
        %s353 = scalar_select %p352, %s24, 1
        %s354 = smul.addr %s353, 2
        %s355 = smul.addr %s354, 4
        %s356 = scalar_lea.vmem %s0, %s355
        %v358 = vld [vmem:[%s3] sm:$0xff]
        %v359 = vld [vmem:[%s3 + $0x8] sm:$0xff]
        %v360 = vld [vmem:[%s356] sm:$0x77]
        %v361 = vld [vmem:[%s2] sm:$0xf]
        %v362 = vld [vmem:[%s2 + $0x4] sm:$0xf]
        %v363 = vld [vmem:[%s2 + $0x8] sm:$0xf]
        %v364 = vld [vmem:[%s2 + $0xc] sm:$0xf]
        %v365 = vld [vmem:[%s2 + $0x10] sm:$0xf]
        %v366 = vld [vmem:[%s2 + $0x14] sm:$0xf]
        %v367 = vld [vmem:[%s2 + $0x18] sm:$0xf]
        %v368 = vld [vmem:[%s2 + $0x1c] sm:$0xf]
        %v369 = vld [vmem:[%s2 + $0x20] sm:$0xf]
        %v370 = vld [vmem:[%s2 + $0x24] sm:$0xf]
        %v371 = vld [vmem:[%s2 + $0x28] sm:$0xf]
        %v372 = vld [vmem:[%s2 + $0x2c] sm:$0xf]
        %v373 = vld [vmem:[%s2 + $0x30] sm:$0xf]
        %v374 = vld [vmem:[%s2 + $0x34] sm:$0xf]
        %v375 = vld [vmem:[%s2 + $0x38] sm:$0xf]
        %v376 = vld [vmem:[%s2 + $0x3c] sm:$0xf]
        %v377 = vld [vmem:[%s2 + $0x40] sm:$0xf]
        %v378 = vld [vmem:[%s2 + $0x44] sm:$0xf]
        %v379 = vld [vmem:[%s2 + $0x48] sm:$0xf]
        %v380 = vld [vmem:[%s2 + $0x4c] sm:$0xf]
        %v381 = vld [vmem:[%s2 + $0x50] sm:$0xf]
        %v382 = vld [vmem:[%s2 + $0x54] sm:$0xf]
        %v383 = vld [vmem:[%s2 + $0x58] sm:$0xf]
        %v384 = vld [vmem:[%s2 + $0x5c] sm:$0xf]
        %v385 = vld [vmem:[%s1] sm:$0x1f]
        %v387 = vunpack.c.l.b16 %v360
        %v388 = vunpack.c.h.b16 %v360
        %v389 = vpack.c.b16 %v387, %v387
        %v390 = vpack.c.b16 %v388, %v388
        %v416 = vunpack.c.l.b16 %v361
        %v417 = vunpack.c.l.b16 %v362
        %v418 = vunpack.c.l.b16 %v363
        %v419 = vunpack.c.l.b16 %v364
        %v420 = vunpack.c.l.b16 %v365
        %v421 = vunpack.c.l.b16 %v366
        %v422 = vunpack.c.l.b16 %v367
        %v423 = vunpack.c.l.b16 %v368
        %v424 = vunpack.c.l.b16 %v369
        %v425 = vunpack.c.l.b16 %v370
        %v426 = vunpack.c.l.b16 %v371
        %v427 = vunpack.c.l.b16 %v372
        %v428 = vunpack.c.l.b16 %v373
        %v429 = vunpack.c.l.b16 %v374
        %v430 = vunpack.c.l.b16 %v375
        %v431 = vunpack.c.l.b16 %v376
        %v432 = vunpack.c.l.b16 %v377
        %v433 = vunpack.c.l.b16 %v378
        %v434 = vunpack.c.l.b16 %v379
        %v435 = vunpack.c.l.b16 %v380
        %v436 = vunpack.c.l.b16 %v381
        %v437 = vunpack.c.l.b16 %v382
        %v438 = vunpack.c.l.b16 %v383
        %v439 = vunpack.c.l.b16 %v384
        %v440 = vpack.c.b16 %v417, %v416
        %v441 = vpack.c.b16 %v419, %v418
        %v442 = vpack.c.b16 %v421, %v420
        %v443 = vpack.c.b16 %v423, %v422
        %v444 = vpack.c.b16 %v425, %v424
        %v445 = vpack.c.b16 %v427, %v426
        %v446 = vpack.c.b16 %v429, %v428
        %v447 = vpack.c.b16 %v431, %v430
        %v448 = vpack.c.b16 %v433, %v432
        %v449 = vpack.c.b16 %v435, %v434
        %v450 = vpack.c.b16 %v437, %v436
        %v451 = vpack.c.b16 %v439, %v438
        %vm464 = vcmask 523264
        %v466 = vsel %vm464, %v390, 0
        %468 = vmatprep.subr.bf16.mxu0 0
        %469 = vmatpush1.bf16.msra.mxu0 %v440
        %470 = vmatprep.subr.bf16.mxu0 0
        %471 = vmatpush1.bf16.msra.mxu0 %v441
        %472 = vmatprep.subr.bf16.mxu0 0
        %473 = vmatpush1.bf16.msra.mxu0 %v442
        %474 = vmatprep.subr.bf16.mxu0 0
        %475 = vmatpush1.bf16.msra.mxu0 %v443
        %476 = vmatprep.subr.bf16.mxu0 0
        %477 = vmatpush1.bf16.msra.mxu0 %v444
        %478 = vmatprep.subr.bf16.mxu0 0
        %479 = vmatpush1.bf16.msra.mxu0 %v445
        %480 = vmatprep.subr.bf16.mxu0 0
        %481 = vmatpush1.bf16.msra.mxu0 %v446
        %482 = vmatprep.subr.bf16.mxu0 0
        %483 = vmatpush1.bf16.msra.mxu0 %v447
        %484 = vmatprep.subr.bf16.mxu0 0
        %485 = vmatpush1.bf16.msra.mxu0 %v448
        %486 = vmatprep.subr.bf16.mxu0 0
        %487 = vmatpush1.bf16.msra.mxu0 %v449
        %488 = vmatprep.subr.bf16.mxu0 0
        %489 = vmatpush1.bf16.msra.mxu0 %v450
        %490 = vmatprep.subr.bf16.mxu0 0
        %491 = vmatpush1.bf16.msra.mxu0 %v451
        %492 = vmatprep.subr.bf16.mxu0 0
        %493 = vmatpush1.bf16.msra.mxu0 0
        %494 = vmatprep.subr.bf16.mxu0 0
        %495 = vmatpush1.bf16.msra.mxu0 0
        %496 = vmatprep.subr.bf16.mxu0 0
        %497 = vmatpush1.bf16.msra.mxu0 0
        %498 = vmatprep.subr.bf16.mxu0 0
        %499 = vmatpush1.bf16.msra.mxu0 0
        %500 = vmatprep.mubr.bf16.mxu0 %v466
        %501 = vmatmul.mubr.bf16.gmra.mrb[0].mxu0 %v389
        %v502 = vpop.f32.mrb[0].mxu0
        %v503 = vadd.f32 %v385, %v502
        %v504 = vpop.f32.mrb[0].mxu0
        %v505 = vpop.f32.mrb[0].mxu0
        %v506 = vpop.f32.mrb[0].mxu0
        %507 = vdwg.mxu0
        %vm508 = vcmask 258048
        %v509 = vsel %vm508, %v503, 0.0
        %510 = vadd.xlane.f32.xlu0 %v509
        %v511 = vpop.xlane.xlu0 %510
        %v512 = vrcp.pop 32.0
        %v513 = vmul.f32 %v511, %v512
        %v514 = vsub.f32 %v503, %v513
        %v515 = vmul.f32 %v514, %v514
        %v516 = vsel %vm508, %v515, 0.0
        %517 = vadd.xlane.f32.xlu0 %v516
        %v518 = vpop.xlane.xlu0 %517
        %v519 = vmul.f32 %v518, %v512
        %v520 = vadd.f32 %v519, 1e-05
        %v521 = vrsqrt.pop %v520
        %v522 = vmul.f32 %v514, %v521
        %v523 = vlaneseq
        %v524 = vshrl.u32 %v523, 7
        %v525 = vsub.s32 0, %v524
        %v526 = vrot.slane %v358, %v525
        %v527 = vmul.f32 %v522, %v526
        %v528 = vlaneseq
        %v529 = vshrl.u32 %v528, 7
        %v530 = vsub.s32 1, %v529
        %v531 = vrot.slane %v358, %v530
        %v532 = vadd.f32 %v527, %v531
        %v533 = vsel %vm508, %v532, 0.0
        %534 = vadd.xlane.f32.xlu0 %v533
        %v535 = vpop.xlane.xlu0 %534
        %v536 = vmul.f32 %v535, %v512
        %v537 = vsub.f32 %v532, %v536
        %v538 = vmul.f32 %v537, %v537
        %v539 = vsel %vm508, %v538, 0.0
        %540 = vadd.xlane.f32.xlu0 %v539
        %v541 = vpop.xlane.xlu0 %540
        %v542 = vmul.f32 %v541, %v512
        %v543 = vadd.f32 %v542, 1e-05
        %v544 = vrsqrt.pop %v543
        %v545 = vmul.f32 %v537, %v544
        %v546 = vlaneseq
        %v547 = vshrl.u32 %v546, 7
        %v548 = vsub.s32 2, %v547
        %v549 = vrot.slane %v358, %v548
        %v550 = vmul.f32 %v545, %v549
        %v551 = vlaneseq
        %v552 = vshrl.u32 %v551, 7
        %v553 = vsub.s32 3, %v552
        %v554 = vrot.slane %v358, %v553
        %v555 = vadd.f32 %v550, %v554
        %v556 = vld [vmem:[%s4] sm:$0xf]
        %v557 = vld [vmem:[%s4 + $0x4] sm:$0xf]
        %v558 = vld [vmem:[%s4 + $0x8] sm:$0xf]
        %v559 = vld [vmem:[%s4 + $0xc] sm:$0xf]
        %v560 = vpack.c.bf16 %v555, %v555
        %v565 = vunpack.c.l.b16 %v556
        %v566 = vunpack.c.l.b16 %v557
        %v567 = vunpack.c.l.b16 %v558
        %v568 = vunpack.c.l.b16 %v559
        %v569 = vpack.c.b16 %v566, %v565
        %v570 = vpack.c.b16 %v568, %v567
        %vm573 = vcmask 261120
        %v575 = vsel %vm573, %v560, 0
        %577 = vmatprep.subr.bf16.mxu0 0
        %578 = vmatpush1.bf16.msra.mxu0 %v569
        %579 = vmatprep.subr.bf16.mxu0 0
        %580 = vmatpush1.bf16.msra.mxu0 %v570
        %581 = vmatprep.subr.bf16.mxu0 0
        %582 = vmatpush1.bf16.msra.mxu0 0
        %583 = vmatprep.subr.bf16.mxu0 0
        %584 = vmatpush1.bf16.msra.mxu0 0
        %585 = vmatprep.subr.bf16.mxu0 0
        %586 = vmatpush1.bf16.msra.mxu0 0
        %587 = vmatprep.subr.bf16.mxu0 0
        %588 = vmatpush1.bf16.msra.mxu0 0
        %589 = vmatprep.subr.bf16.mxu0 0
        %590 = vmatpush1.bf16.msra.mxu0 0
        %591 = vmatprep.subr.bf16.mxu0 0
        %592 = vmatpush1.bf16.msra.mxu0 0
        %593 = vmatprep.subr.bf16.mxu0 0
        %594 = vmatpush1.bf16.msra.mxu0 0
        %595 = vmatprep.subr.bf16.mxu0 0
        %596 = vmatpush1.bf16.msra.mxu0 0
        %597 = vmatprep.subr.bf16.mxu0 0
        %598 = vmatpush1.bf16.msra.mxu0 0
        %599 = vmatprep.subr.bf16.mxu0 0
        %600 = vmatpush1.bf16.msra.mxu0 0
        %601 = vmatprep.subr.bf16.mxu0 0
        %602 = vmatpush1.bf16.msra.mxu0 0
        %603 = vmatprep.subr.bf16.mxu0 0
        %604 = vmatpush1.bf16.msra.mxu0 0
        %605 = vmatprep.subr.bf16.mxu0 0
        %606 = vmatpush1.bf16.msra.mxu0 0
        %607 = vmatprep.subr.bf16.mxu0 0
        %608 = vmatpush1.bf16.msra.mxu0 0
        %609 = vmatprep.mubr.bf16.mxu0 0
        %610 = vmatmul.mubr.bf16.gmra.mrb[0].mxu0 %v575
        %v611 = vpop.f32.mrb[0].mxu0
        %v612 = vadd.f32 0.0, %v611
        %v613 = vpop.f32.mrb[0].mxu0
        %v614 = vpop.f32.mrb[0].mxu0
        %v615 = vpop.f32.mrb[0].mxu0
        %616 = vdwg.mxu0
        %v617 = vlaneseq
        %v618 = vshrl.u32 %v617, 7
        %v619 = vsub.s32 2, %v618
        %v620 = vrot.slane %v359, %v619
        %v621 = vadd.f32 %v612, %v620
        %v622 = vlaneseq
        %v623 = vshrl.u32 %v622, 7
        %v624 = vsub.s32 3, %v623
        %v625 = vrot.slane %v359, %v624
        %627 = vrot.lane.b32.xlu0 %v625, 32
        %v628 = vpop.permute.xlu0 %627
        %v630 = vadd.f32 %v612, %v628
        %v631 = vlaneseq
        %v632 = vshrl.u32 %v631, 7
        %v633 = vsub.s32 4, %v632
        %v634 = vrot.slane %v359, %v633
        %636 = vrot.lane.b32.xlu0 %v634, 64
        %v637 = vpop.permute.xlu0 %636
        %v639 = vadd.f32 %v612, %v637
        %641 = vrot.lane.b32.xlu0 %v621, 120
        %v642 = vpop.permute.xlu0 %641
        %644 = vrot.lane.b32.xlu0 %v621, 112
        %v645 = vpop.permute.xlu0 %644
        %647 = vrot.lane.b32.xlu0 %v621, 104
        %v648 = vpop.permute.xlu0 %647
        %v650 = vpack.c.bf16 %v621, %v621
        %v651 = vpack.c.bf16 %v642, %v642
        %v652 = vpack.c.bf16 %v645, %v645
        %v653 = vpack.c.bf16 %v648, %v648
        %655 = vrot.lane.b32.xlu0 %v630, 120
        %v656 = vpop.permute.xlu0 %655
        %658 = vrot.lane.b32.xlu0 %v630, 112
        %v659 = vpop.permute.xlu0 %658
        %661 = vrot.lane.b32.xlu0 %v630, 104
        %v662 = vpop.permute.xlu0 %661
        %v664 = vpack.c.bf16 %v630, %v630
        %v665 = vpack.c.bf16 %v656, %v656
        %v666 = vpack.c.bf16 %v659, %v659
        %v667 = vpack.c.bf16 %v662, %v662
        %669 = vrot.lane.b32.xlu0 %v639, 120
        %v670 = vpop.permute.xlu0 %669
        %672 = vrot.lane.b32.xlu0 %v639, 112
        %v673 = vpop.permute.xlu0 %672
        %675 = vrot.lane.b32.xlu0 %v639, 104
        %v676 = vpop.permute.xlu0 %675
        %v678 = vpack.c.bf16 %v639, %v639
        %v679 = vpack.c.bf16 %v670, %v670
        %v680 = vpack.c.bf16 %v673, %v673
        %v681 = vpack.c.bf16 %v676, %v676
        %683 = vrot.lane.b32.xlu0 %v664, 96
        %v684 = vpop.permute.xlu0 %683
        %vm685 = vcmask 64512
        %v687 = vsel %vm685, %v650, 0
        %v690 = vsel %vm685, %v684, 0
        %692 = vmatprep.subr.bf16.mxu0 0
        %693 = vmatpush1.bf16.xpose.msra.mxu0 %v690
        %694 = vmatprep.subr.bf16.mxu0 0
        %695 = vmatpush1.bf16.xpose.msra.mxu0 0
        %696 = vmatprep.subr.bf16.mxu0 0
        %697 = vmatpush1.bf16.xpose.msra.mxu0 0
        %698 = vmatprep.subr.bf16.mxu0 0
        %699 = vmatpush1.bf16.xpose.msra.mxu0 0
        %700 = vmatprep.subr.bf16.mxu0 0
        %701 = vmatpush1.bf16.xpose.msra.mxu0 0
        %702 = vmatprep.subr.bf16.mxu0 0
        %703 = vmatpush1.bf16.xpose.msra.mxu0 0
        %704 = vmatprep.subr.bf16.mxu0 0
        %705 = vmatpush1.bf16.xpose.msra.mxu0 0
        %706 = vmatprep.subr.bf16.mxu0 0
        %707 = vmatpush1.bf16.xpose.msra.mxu0 0
        %708 = vmatprep.subr.bf16.mxu0 0
        %709 = vmatpush1.bf16.xpose.msra.mxu0 0
        %710 = vmatprep.subr.bf16.mxu0 0
        %711 = vmatpush1.bf16.xpose.msra.mxu0 0
        %712 = vmatprep.subr.bf16.mxu0 0
        %713 = vmatpush1.bf16.xpose.msra.mxu0 0
        %714 = vmatprep.subr.bf16.mxu0 0
        %715 = vmatpush1.bf16.xpose.msra.mxu0 0
        %716 = vmatprep.subr.bf16.mxu0 0
        %717 = vmatpush1.bf16.xpose.msra.mxu0 0
        %718 = vmatprep.subr.bf16.mxu0 0
        %719 = vmatpush1.bf16.xpose.msra.mxu0 0
        %720 = vmatprep.subr.bf16.mxu0 0
        %721 = vmatpush1.bf16.xpose.msra.mxu0 0
        %722 = vmatprep.subr.bf16.mxu0 0
        %723 = vmatpush1.bf16.xpose.msra.mxu0 0
        %724 = vmatprep.mubr.bf16.mxu0 0
        %725 = vmatmul.mubr.bf16.gmra.mrb[0].mxu0 %v687
        %v726 = vpop.f32.mrb[0].mxu0
        %v727 = vadd.f32 0.0, %v726
        %v728 = vpop.f32.mrb[0].mxu0
        %v729 = vpop.f32.mrb[0].mxu0
        %v730 = vpop.f32.mrb[0].mxu0
        %731 = vdwg.mxu0
        %733 = vrot.lane.b32.xlu0 %v665, 96
        %v734 = vpop.permute.xlu0 %733
        %v736 = vsel %vm685, %v651, 0
        %v739 = vsel %vm685, %v734, 0
        %741 = vmatprep.subr.bf16.mxu0 0
        %742 = vmatpush1.bf16.xpose.msra.mxu0 %v739
        %743 = vmatprep.subr.bf16.mxu0 0
        %744 = vmatpush1.bf16.xpose.msra.mxu0 0
        %745 = vmatprep.subr.bf16.mxu0 0
        %746 = vmatpush1.bf16.xpose.msra.mxu0 0
        %747 = vmatprep.subr.bf16.mxu0 0
        %748 = vmatpush1.bf16.xpose.msra.mxu0 0
        %749 = vmatprep.subr.bf16.mxu0 0
        %750 = vmatpush1.bf16.xpose.msra.mxu0 0
        %751 = vmatprep.subr.bf16.mxu0 0
        %752 = vmatpush1.bf16.xpose.msra.mxu0 0
        %753 = vmatprep.subr.bf16.mxu0 0
        %754 = vmatpush1.bf16.xpose.msra.mxu0 0
        %755 = vmatprep.subr.bf16.mxu0 0
        %756 = vmatpush1.bf16.xpose.msra.mxu0 0
        %757 = vmatprep.subr.bf16.mxu0 0
        %758 = vmatpush1.bf16.xpose.msra.mxu0 0
        %759 = vmatprep.subr.bf16.mxu0 0
        %760 = vmatpush1.bf16.xpose.msra.mxu0 0
        %761 = vmatprep.subr.bf16.mxu0 0
        %762 = vmatpush1.bf16.xpose.msra.mxu0 0
        %763 = vmatprep.subr.bf16.mxu0 0
        %764 = vmatpush1.bf16.xpose.msra.mxu0 0
        %765 = vmatprep.subr.bf16.mxu0 0
        %766 = vmatpush1.bf16.xpose.msra.mxu0 0
        %767 = vmatprep.subr.bf16.mxu0 0
        %768 = vmatpush1.bf16.xpose.msra.mxu0 0
        %769 = vmatprep.subr.bf16.mxu0 0
        %770 = vmatpush1.bf16.xpose.msra.mxu0 0
        %771 = vmatprep.subr.bf16.mxu0 0
        %772 = vmatpush1.bf16.xpose.msra.mxu0 0
        %773 = vmatprep.mubr.bf16.mxu0 0
        %774 = vmatmul.mubr.bf16.gmra.mrb[0].mxu0 %v736
        %v775 = vpop.f32.mrb[0].mxu0
        %v776 = vadd.f32 0.0, %v775
        %v777 = vpop.f32.mrb[0].mxu0
        %v778 = vpop.f32.mrb[0].mxu0
        %v779 = vpop.f32.mrb[0].mxu0
        %780 = vdwg.mxu0
        %782 = vrot.lane.b32.xlu0 %v666, 96
        %v783 = vpop.permute.xlu0 %782
        %v785 = vsel %vm685, %v652, 0
        %v788 = vsel %vm685, %v783, 0
        %790 = vmatprep.subr.bf16.mxu0 0
        %791 = vmatpush1.bf16.xpose.msra.mxu0 %v788
        %792 = vmatprep.subr.bf16.mxu0 0
        %793 = vmatpush1.bf16.xpose.msra.mxu0 0
        %794 = vmatprep.subr.bf16.mxu0 0
        %795 = vmatpush1.bf16.xpose.msra.mxu0 0
        %796 = vmatprep.subr.bf16.mxu0 0
        %797 = vmatpush1.bf16.xpose.msra.mxu0 0
        %798 = vmatprep.subr.bf16.mxu0 0
        %799 = vmatpush1.bf16.xpose.msra.mxu0 0
        %800 = vmatprep.subr.bf16.mxu0 0
        %801 = vmatpush1.bf16.xpose.msra.mxu0 0
        %802 = vmatprep.subr.bf16.mxu0 0
        %803 = vmatpush1.bf16.xpose.msra.mxu0 0
        %804 = vmatprep.subr.bf16.mxu0 0
        %805 = vmatpush1.bf16.xpose.msra.mxu0 0
        %806 = vmatprep.subr.bf16.mxu0 0
        %807 = vmatpush1.bf16.xpose.msra.mxu0 0
        %808 = vmatprep.subr.bf16.mxu0 0
        %809 = vmatpush1.bf16.xpose.msra.mxu0 0
        %810 = vmatprep.subr.bf16.mxu0 0
        %811 = vmatpush1.bf16.xpose.msra.mxu0 0
        %812 = vmatprep.subr.bf16.mxu0 0
        %813 = vmatpush1.bf16.xpose.msra.mxu0 0
        %814 = vmatprep.subr.bf16.mxu0 0
        %815 = vmatpush1.bf16.xpose.msra.mxu0 0
        %816 = vmatprep.subr.bf16.mxu0 0
        %817 = vmatpush1.bf16.xpose.msra.mxu0 0
        %818 = vmatprep.subr.bf16.mxu0 0
        %819 = vmatpush1.bf16.xpose.msra.mxu0 0
        %820 = vmatprep.subr.bf16.mxu0 0
        %821 = vmatpush1.bf16.xpose.msra.mxu0 0
        %822 = vmatprep.mubr.bf16.mxu0 0
        %823 = vmatmul.mubr.bf16.gmra.mrb[0].mxu0 %v785
        %v824 = vpop.f32.mrb[0].mxu0
        %v825 = vadd.f32 0.0, %v824
        %v826 = vpop.f32.mrb[0].mxu0
        %v827 = vpop.f32.mrb[0].mxu0
        %v828 = vpop.f32.mrb[0].mxu0
        %829 = vdwg.mxu0
        %831 = vrot.lane.b32.xlu0 %v667, 96
        %v832 = vpop.permute.xlu0 %831
        %v834 = vsel %vm685, %v653, 0
        %v837 = vsel %vm685, %v832, 0
        %839 = vmatprep.subr.bf16.mxu0 0
        %840 = vmatpush1.bf16.xpose.msra.mxu0 %v837
        %841 = vmatprep.subr.bf16.mxu0 0
        %842 = vmatpush1.bf16.xpose.msra.mxu0 0
        %843 = vmatprep.subr.bf16.mxu0 0
        %844 = vmatpush1.bf16.xpose.msra.mxu0 0
        %845 = vmatprep.subr.bf16.mxu0 0
        %846 = vmatpush1.bf16.xpose.msra.mxu0 0
        %847 = vmatprep.subr.bf16.mxu0 0
        %848 = vmatpush1.bf16.xpose.msra.mxu0 0
        %849 = vmatprep.subr.bf16.mxu0 0
        %850 = vmatpush1.bf16.xpose.msra.mxu0 0
        %851 = vmatprep.subr.bf16.mxu0 0
        %852 = vmatpush1.bf16.xpose.msra.mxu0 0
        %853 = vmatprep.subr.bf16.mxu0 0
        %854 = vmatpush1.bf16.xpose.msra.mxu0 0
        %855 = vmatprep.subr.bf16.mxu0 0
        %856 = vmatpush1.bf16.xpose.msra.mxu0 0
        %857 = vmatprep.subr.bf16.mxu0 0
        %858 = vmatpush1.bf16.xpose.msra.mxu0 0
        %859 = vmatprep.subr.bf16.mxu0 0
        %860 = vmatpush1.bf16.xpose.msra.mxu0 0
        %861 = vmatprep.subr.bf16.mxu0 0
        %862 = vmatpush1.bf16.xpose.msra.mxu0 0
        %863 = vmatprep.subr.bf16.mxu0 0
        %864 = vmatpush1.bf16.xpose.msra.mxu0 0
        %865 = vmatprep.subr.bf16.mxu0 0
        %866 = vmatpush1.bf16.xpose.msra.mxu0 0
        %867 = vmatprep.subr.bf16.mxu0 0
        %868 = vmatpush1.bf16.xpose.msra.mxu0 0
        %869 = vmatprep.subr.bf16.mxu0 0
        %870 = vmatpush1.bf16.xpose.msra.mxu0 0
        %871 = vmatprep.mubr.bf16.mxu0 0
        %872 = vmatmul.mubr.bf16.gmra.mrb[0].mxu0 %v834
        %v873 = vpop.f32.mrb[0].mxu0
        %v874 = vadd.f32 0.0, %v873
        %v875 = vpop.f32.mrb[0].mxu0
        %v876 = vpop.f32.mrb[0].mxu0
        %v877 = vpop.f32.mrb[0].mxu0
        %878 = vdwg.mxu0
        %v879 = vmul.f32 %v727, 0.35355338
        %v880 = vmul.f32 %v776, 0.35355338
        %v881 = vmul.f32 %v825, 0.35355338
        %v882 = vmul.f32 %v874, 0.35355338
        %vm883 = vcmask 36864
        %v884 = vsel %vm883, %v879, -inf
        %885 = vmax.xlane.f32.xlu0 %v884
        %v886 = vpop.xlane.xlu0 %885
        %v887 = vsel %vm883, %v880, -inf
        %888 = vmax.xlane.f32.xlu0 %v887
        %v889 = vpop.xlane.xlu0 %888
        %v890 = vsel %vm883, %v881, -inf
        %891 = vmax.xlane.f32.xlu0 %v890
        %v892 = vpop.xlane.xlu0 %891
        %v893 = vsel %vm883, %v882, -inf
        %894 = vmax.xlane.f32.xlu0 %v893
        %v895 = vpop.xlane.xlu0 %894
        %v896 = vsub.f32 %v879, %v886
        %v897 = vsub.f32 %v880, %v889
        %v898 = vsub.f32 %v881, %v892
        %v899 = vsub.f32 %v882, %v895
        %v900 = vmul.f32 %v896, 1.442695
        %v901 = vpow.pop %v900
        %v902 = vmul.f32 %v897, 1.442695
        %v903 = vpow.pop %v902
        %v904 = vmul.f32 %v898, 1.442695
        %v905 = vpow.pop %v904
        %v906 = vmul.f32 %v899, 1.442695
        %v907 = vpow.pop %v906
        %v908 = vsel %vm883, %v901, 0.0
        %909 = vadd.xlane.f32.xlu0 %v908
        %v910 = vpop.xlane.xlu0 %909
        %v911 = vsel %vm883, %v903, 0.0
        %912 = vadd.xlane.f32.xlu0 %v911
        %v913 = vpop.xlane.xlu0 %912
        %v914 = vsel %vm883, %v905, 0.0
        %915 = vadd.xlane.f32.xlu0 %v914
        %v916 = vpop.xlane.xlu0 %915
        %v917 = vsel %vm883, %v907, 0.0
        %918 = vadd.xlane.f32.xlu0 %v917
        %v919 = vpop.xlane.xlu0 %918
        %v920 = vrcp.pop %v910
        %v921 = vmul.f32 %v901, %v920
        %v922 = vrcp.pop %v913
        %v923 = vmul.f32 %v903, %v922
        %v924 = vrcp.pop %v916
        %v925 = vmul.f32 %v905, %v924
        %v926 = vrcp.pop %v919
        %v927 = vmul.f32 %v907, %v926
        %v928 = vpack.c.bf16 %v921, %v921
        %v929 = vpack.c.bf16 %v923, %v923
        %v930 = vpack.c.bf16 %v925, %v925
        %v931 = vpack.c.bf16 %v927, %v927
        %933 = vrot.lane.b32.xlu0 %v678, 64
        %v934 = vpop.permute.xlu0 %933
        %vm935 = vcmask 39936
        %v937 = vsel %vm935, %v928, 0
        %vm939 = vcmask 1041408
        %vm940 = vcmask 1042432
        %v941 = vsel %vm939, 4294967295, 65535
        %v942 = vsel %vm940, %v941, 0
        %v944 = vand.u32 %v934, %v942
        %946 = vmatprep.subr.bf16.mxu0 0
        %947 = vmatpush1.bf16.msra.mxu0 %v944
        %948 = vmatprep.subr.bf16.mxu0 0
        %949 = vmatpush1.bf16.msra.mxu0 0
        %950 = vmatprep.subr.bf16.mxu0 0
        %951 = vmatpush1.bf16.msra.mxu0 0
        %952 = vmatprep.subr.bf16.mxu0 0
        %953 = vmatpush1.bf16.msra.mxu0 0
        %954 = vmatprep.subr.bf16.mxu0 0
        %955 = vmatpush1.bf16.msra.mxu0 0
        %956 = vmatprep.subr.bf16.mxu0 0
        %957 = vmatpush1.bf16.msra.mxu0 0
        %958 = vmatprep.subr.bf16.mxu0 0
        %959 = vmatpush1.bf16.msra.mxu0 0
        %960 = vmatprep.subr.bf16.mxu0 0
        %961 = vmatpush1.bf16.msra.mxu0 0
        %962 = vmatprep.subr.bf16.mxu0 0
        %963 = vmatpush1.bf16.msra.mxu0 0
        %964 = vmatprep.subr.bf16.mxu0 0
        %965 = vmatpush1.bf16.msra.mxu0 0
        %966 = vmatprep.subr.bf16.mxu0 0
        %967 = vmatpush1.bf16.msra.mxu0 0
        %968 = vmatprep.subr.bf16.mxu0 0
        %969 = vmatpush1.bf16.msra.mxu0 0
        %970 = vmatprep.subr.bf16.mxu0 0
        %971 = vmatpush1.bf16.msra.mxu0 0
        %972 = vmatprep.subr.bf16.mxu0 0
        %973 = vmatpush1.bf16.msra.mxu0 0
        %974 = vmatprep.subr.bf16.mxu0 0
        %975 = vmatpush1.bf16.msra.mxu0 0
        %976 = vmatprep.subr.bf16.mxu0 0
        %977 = vmatpush1.bf16.msra.mxu0 0
        %978 = vmatprep.mubr.bf16.mxu0 0
        %979 = vmatmul.mubr.bf16.gmra.mrb[0].mxu0 %v937
        %v980 = vpop.f32.mrb[0].mxu0
        %v981 = vadd.f32 0.0, %v980
        %v982 = vpop.f32.mrb[0].mxu0
        %v983 = vpop.f32.mrb[0].mxu0
        %v984 = vpop.f32.mrb[0].mxu0
        %985 = vdwg.mxu0
        %987 = vrot.lane.b32.xlu0 %v679, 64
        %v988 = vpop.permute.xlu0 %987
        %v990 = vsel %vm935, %v929, 0
        %v993 = vand.u32 %v988, %v942
        %995 = vmatprep.subr.bf16.mxu0 0
        %996 = vmatpush1.bf16.msra.mxu0 %v993
        %997 = vmatprep.subr.bf16.mxu0 0
        %998 = vmatpush1.bf16.msra.mxu0 0
        %999 = vmatprep.subr.bf16.mxu0 0
        %1000 = vmatpush1.bf16.msra.mxu0 0
        %1001 = vmatprep.subr.bf16.mxu0 0
        %1002 = vmatpush1.bf16.msra.mxu0 0
        %1003 = vmatprep.subr.bf16.mxu0 0
        %1004 = vmatpush1.bf16.msra.mxu0 0
        %1005 = vmatprep.subr.bf16.mxu0 0
        %1006 = vmatpush1.bf16.msra.mxu0 0
        %1007 = vmatprep.subr.bf16.mxu0 0
        %1008 = vmatpush1.bf16.msra.mxu0 0
        %1009 = vmatprep.subr.bf16.mxu0 0
        %1010 = vmatpush1.bf16.msra.mxu0 0
        %1011 = vmatprep.subr.bf16.mxu0 0
        %1012 = vmatpush1.bf16.msra.mxu0 0
        %1013 = vmatprep.subr.bf16.mxu0 0
        %1014 = vmatpush1.bf16.msra.mxu0 0
        %1015 = vmatprep.subr.bf16.mxu0 0
        %1016 = vmatpush1.bf16.msra.mxu0 0
        %1017 = vmatprep.subr.bf16.mxu0 0
        %1018 = vmatpush1.bf16.msra.mxu0 0
        %1019 = vmatprep.subr.bf16.mxu0 0
        %1020 = vmatpush1.bf16.msra.mxu0 0
        %1021 = vmatprep.subr.bf16.mxu0 0
        %1022 = vmatpush1.bf16.msra.mxu0 0
        %1023 = vmatprep.subr.bf16.mxu0 0
        %1024 = vmatpush1.bf16.msra.mxu0 0
        %1025 = vmatprep.subr.bf16.mxu0 0
        %1026 = vmatpush1.bf16.msra.mxu0 0
        %1027 = vmatprep.mubr.bf16.mxu0 0
        %1028 = vmatmul.mubr.bf16.gmra.mrb[0].mxu0 %v990
        %v1029 = vpop.f32.mrb[0].mxu0
        %v1030 = vadd.f32 0.0, %v1029
        %v1031 = vpop.f32.mrb[0].mxu0
        %v1032 = vpop.f32.mrb[0].mxu0
        %v1033 = vpop.f32.mrb[0].mxu0
        %1034 = vdwg.mxu0
        %1036 = vrot.lane.b32.xlu0 %v680, 64
        %v1037 = vpop.permute.xlu0 %1036
        %v1039 = vsel %vm935, %v930, 0
        %v1042 = vand.u32 %v1037, %v942
        %1044 = vmatprep.subr.bf16.mxu0 0
        %1045 = vmatpush1.bf16.msra.mxu0 %v1042
        %1046 = vmatprep.subr.bf16.mxu0 0
        %1047 = vmatpush1.bf16.msra.mxu0 0
        %1048 = vmatprep.subr.bf16.mxu0 0
        %1049 = vmatpush1.bf16.msra.mxu0 0
        %1050 = vmatprep.subr.bf16.mxu0 0
        %1051 = vmatpush1.bf16.msra.mxu0 0
        %1052 = vmatprep.subr.bf16.mxu0 0
        %1053 = vmatpush1.bf16.msra.mxu0 0
        %1054 = vmatprep.subr.bf16.mxu0 0
        %1055 = vmatpush1.bf16.msra.mxu0 0
        %1056 = vmatprep.subr.bf16.mxu0 0
        %1057 = vmatpush1.bf16.msra.mxu0 0
        %1058 = vmatprep.subr.bf16.mxu0 0
        %1059 = vmatpush1.bf16.msra.mxu0 0
        %1060 = vmatprep.subr.bf16.mxu0 0
        %1061 = vmatpush1.bf16.msra.mxu0 0
        %1062 = vmatprep.subr.bf16.mxu0 0
        %1063 = vmatpush1.bf16.msra.mxu0 0
        %1064 = vmatprep.subr.bf16.mxu0 0
        %1065 = vmatpush1.bf16.msra.mxu0 0
        %1066 = vmatprep.subr.bf16.mxu0 0
        %1067 = vmatpush1.bf16.msra.mxu0 0
        %1068 = vmatprep.subr.bf16.mxu0 0
        %1069 = vmatpush1.bf16.msra.mxu0 0
        %1070 = vmatprep.subr.bf16.mxu0 0
        %1071 = vmatpush1.bf16.msra.mxu0 0
        %1072 = vmatprep.subr.bf16.mxu0 0
        %1073 = vmatpush1.bf16.msra.mxu0 0
        %1074 = vmatprep.subr.bf16.mxu0 0
        %1075 = vmatpush1.bf16.msra.mxu0 0
        %1076 = vmatprep.mubr.bf16.mxu0 0
        %1077 = vmatmul.mubr.bf16.gmra.mrb[0].mxu0 %v1039
        %v1078 = vpop.f32.mrb[0].mxu0
        %v1079 = vadd.f32 0.0, %v1078
        %v1080 = vpop.f32.mrb[0].mxu0
        %v1081 = vpop.f32.mrb[0].mxu0
        %v1082 = vpop.f32.mrb[0].mxu0
        %1083 = vdwg.mxu0
        %1085 = vrot.lane.b32.xlu0 %v681, 64
        %v1086 = vpop.permute.xlu0 %1085
        %v1088 = vsel %vm935, %v931, 0
        %v1091 = vand.u32 %v1086, %v942
        %1093 = vmatprep.subr.bf16.mxu0 0
        %1094 = vmatpush1.bf16.msra.mxu0 %v1091
        %1095 = vmatprep.subr.bf16.mxu0 0
        %1096 = vmatpush1.bf16.msra.mxu0 0
        %1097 = vmatprep.subr.bf16.mxu0 0
        %1098 = vmatpush1.bf16.msra.mxu0 0
        %1099 = vmatprep.subr.bf16.mxu0 0
        %1100 = vmatpush1.bf16.msra.mxu0 0
        %1101 = vmatprep.subr.bf16.mxu0 0
        %1102 = vmatpush1.bf16.msra.mxu0 0
        %1103 = vmatprep.subr.bf16.mxu0 0
        %1104 = vmatpush1.bf16.msra.mxu0 0
        %1105 = vmatprep.subr.bf16.mxu0 0
        %1106 = vmatpush1.bf16.msra.mxu0 0
        %1107 = vmatprep.subr.bf16.mxu0 0
        %1108 = vmatpush1.bf16.msra.mxu0 0
        %1109 = vmatprep.subr.bf16.mxu0 0
        %1110 = vmatpush1.bf16.msra.mxu0 0
        %1111 = vmatprep.subr.bf16.mxu0 0
        %1112 = vmatpush1.bf16.msra.mxu0 0
        %1113 = vmatprep.subr.bf16.mxu0 0
        %1114 = vmatpush1.bf16.msra.mxu0 0
        %1115 = vmatprep.subr.bf16.mxu0 0
        %1116 = vmatpush1.bf16.msra.mxu0 0
        %1117 = vmatprep.subr.bf16.mxu0 0
        %1118 = vmatpush1.bf16.msra.mxu0 0
        %1119 = vmatprep.subr.bf16.mxu0 0
        %1120 = vmatpush1.bf16.msra.mxu0 0
        %1121 = vmatprep.subr.bf16.mxu0 0
        %1122 = vmatpush1.bf16.msra.mxu0 0
        %1123 = vmatprep.subr.bf16.mxu0 0
        %1124 = vmatpush1.bf16.msra.mxu0 0
        %1125 = vmatprep.mubr.bf16.mxu0 0
        %1126 = vmatmul.mubr.bf16.gmra.mrb[0].mxu0 %v1088
        %v1127 = vpop.f32.mrb[0].mxu0
        %v1128 = vadd.f32 0.0, %v1127
        %v1129 = vpop.f32.mrb[0].mxu0
        %v1130 = vpop.f32.mrb[0].mxu0
        %v1131 = vpop.f32.mrb[0].mxu0
        %1132 = vdwg.mxu0
        %1134 = vrot.lane.b32.xlu0 %v1030, 8
        %v1135 = vpop.permute.xlu0 %1134
        %1138 = vrot.lane.b32.xlu0 %v1079, 16
        %v1139 = vpop.permute.xlu0 %1138
        %1142 = vrot.lane.b32.xlu0 %v1128, 24
        %v1143 = vpop.permute.xlu0 %1142
        %v1145 = vsel %vm685, %v981, %v1135
        %vm1146 = vcmask 130048
        %v1147 = vsel %vm1146, %v1145, %v1139
        %vm1148 = vcmask 195584
        %v1149 = vsel %vm1148, %v1147, %v1143
        %v1150 = vld [vmem:[%s5] sm:$0xf]
        %v1151 = vld [vmem:[%s5 + $0x4] sm:$0xf]
        %v1152 = vld [vmem:[%s5 + $0x8] sm:$0xf]
        %v1153 = vld [vmem:[%s5 + $0xc] sm:$0xf]
        %v1154 = vpack.c.bf16 %v1149, %v1149
        %v1159 = vunpack.c.l.b16 %v1150
        %v1160 = vunpack.c.l.b16 %v1151
        %v1161 = vunpack.c.l.b16 %v1152
        %v1162 = vunpack.c.l.b16 %v1153
        %v1163 = vpack.c.b16 %v1160, %v1159
        %v1164 = vpack.c.b16 %v1162, %v1161
        %v1168 = vsel %vm573, %v1154, 0
        %1170 = vmatprep.subr.bf16.mxu0 0
        %1171 = vmatpush1.bf16.msra.mxu0 %v1163
        %1172 = vmatprep.subr.bf16.mxu0 0
        %1173 = vmatpush1.bf16.msra.mxu0 %v1164
        %1174 = vmatprep.subr.bf16.mxu0 0
        %1175 = vmatpush1.bf16.msra.mxu0 0
        %1176 = vmatprep.subr.bf16.mxu0 0
        %1177 = vmatpush1.bf16.msra.mxu0 0
        %1178 = vmatprep.subr.bf16.mxu0 0
        %1179 = vmatpush1.bf16.msra.mxu0 0
        %1180 = vmatprep.subr.bf16.mxu0 0
        %1181 = vmatpush1.bf16.msra.mxu0 0
        %1182 = vmatprep.subr.bf16.mxu0 0
        %1183 = vmatpush1.bf16.msra.mxu0 0
        %1184 = vmatprep.subr.bf16.mxu0 0
        %1185 = vmatpush1.bf16.msra.mxu0 0
        %1186 = vmatprep.subr.bf16.mxu0 0
        %1187 = vmatpush1.bf16.msra.mxu0 0
        %1188 = vmatprep.subr.bf16.mxu0 0
        %1189 = vmatpush1.bf16.msra.mxu0 0
        %1190 = vmatprep.subr.bf16.mxu0 0
        %1191 = vmatpush1.bf16.msra.mxu0 0
        %1192 = vmatprep.subr.bf16.mxu0 0
        %1193 = vmatpush1.bf16.msra.mxu0 0
        %1194 = vmatprep.subr.bf16.mxu0 0
        %1195 = vmatpush1.bf16.msra.mxu0 0
        %1196 = vmatprep.subr.bf16.mxu0 0
        %1197 = vmatpush1.bf16.msra.mxu0 0
        %1198 = vmatprep.subr.bf16.mxu0 0
        %1199 = vmatpush1.bf16.msra.mxu0 0
        %1200 = vmatprep.subr.bf16.mxu0 0
        %1201 = vmatpush1.bf16.msra.mxu0 0
        %1202 = vmatprep.mubr.bf16.mxu0 0
        %1203 = vmatmul.mubr.bf16.gmra.mrb[0].mxu0 %v1168
        %v1204 = vpop.f32.mrb[0].mxu0
        %v1205 = vadd.f32 0.0, %v1204
        %v1206 = vpop.f32.mrb[0].mxu0
        %v1207 = vpop.f32.mrb[0].mxu0
        %v1208 = vpop.f32.mrb[0].mxu0
        %1209 = vdwg.mxu0
        %v1210 = vadd.f32 %v532, %v1205
        %v1211 = vlaneseq
        %v1212 = vshrl.u32 %v1211, 7
        %v1213 = vsub.s32 0, %v1212
        %v1214 = vrot.slane %v359, %v1213
        %v1215 = vadd.f32 %v1210, %v1214
        %v1216 = vsel %vm508, %v1215, 0.0
        %1217 = vadd.xlane.f32.xlu0 %v1216
        %v1218 = vpop.xlane.xlu0 %1217
        %v1219 = vmul.f32 %v1218, %v512
        %v1220 = vsub.f32 %v1215, %v1219
        %v1221 = vmul.f32 %v1220, %v1220
        %v1222 = vsel %vm508, %v1221, 0.0
        %1223 = vadd.xlane.f32.xlu0 %v1222
        %v1224 = vpop.xlane.xlu0 %1223
        %v1225 = vmul.f32 %v1224, %v512
        %v1226 = vadd.f32 %v1225, 1e-05
        %v1227 = vrsqrt.pop %v1226
        %v1228 = vmul.f32 %v1220, %v1227
        %v1229 = vlaneseq
        %v1230 = vshrl.u32 %v1229, 7
        %v1231 = vsub.s32 4, %v1230
        %v1232 = vrot.slane %v358, %v1231
        %v1233 = vmul.f32 %v1228, %v1232
        %v1234 = vlaneseq
        %v1235 = vshrl.u32 %v1234, 7
        %v1236 = vsub.s32 5, %v1235
        %v1237 = vrot.slane %v358, %v1236
        %v1238 = vadd.f32 %v1233, %v1237
        %v1239 = vld [vmem:[%s6] sm:$0xf]
        %v1240 = vld [vmem:[%s6 + $0x4] sm:$0xf]
        %v1241 = vld [vmem:[%s6 + $0x8] sm:$0xf]
        %v1242 = vld [vmem:[%s6 + $0xc] sm:$0xf]
        %v1243 = vpack.c.bf16 %v1238, %v1238
        %v1244 = vld [vmem:[%s7] sm:$0x1]
        %v1246 = vlaneseq
        %v1247 = vshrl.u32 %v1246, 7
        %v1248 = vsub.s32 0, %v1247
        %v1249 = vrot.slane %v1244, %v1248
        %v1255 = vunpack.c.l.b16 %v1239
        %v1256 = vunpack.c.l.b16 %v1240
        %v1257 = vunpack.c.l.b16 %v1241
        %v1258 = vunpack.c.l.b16 %v1242
        %v1259 = vpack.c.b16 %v1256, %v1255
        %v1260 = vpack.c.b16 %v1258, %v1257
        %v1264 = vsel %vm573, %v1243, 0
        %1266 = vmatprep.subr.bf16.mxu0 0
        %1267 = vmatpush1.bf16.msra.mxu0 %v1259
        %1268 = vmatprep.subr.bf16.mxu0 0
        %1269 = vmatpush1.bf16.msra.mxu0 %v1260
        %1270 = vmatprep.subr.bf16.mxu0 0
        %1271 = vmatpush1.bf16.msra.mxu0 0
        %1272 = vmatprep.subr.bf16.mxu0 0
        %1273 = vmatpush1.bf16.msra.mxu0 0
        %1274 = vmatprep.subr.bf16.mxu0 0
        %1275 = vmatpush1.bf16.msra.mxu0 0
        %1276 = vmatprep.subr.bf16.mxu0 0
        %1277 = vmatpush1.bf16.msra.mxu0 0
        %1278 = vmatprep.subr.bf16.mxu0 0
        %1279 = vmatpush1.bf16.msra.mxu0 0
        %1280 = vmatprep.subr.bf16.mxu0 0
        %1281 = vmatpush1.bf16.msra.mxu0 0
        %1282 = vmatprep.subr.bf16.mxu0 0
        %1283 = vmatpush1.bf16.msra.mxu0 0
        %1284 = vmatprep.subr.bf16.mxu0 0
        %1285 = vmatpush1.bf16.msra.mxu0 0
        %1286 = vmatprep.subr.bf16.mxu0 0
        %1287 = vmatpush1.bf16.msra.mxu0 0
        %1288 = vmatprep.subr.bf16.mxu0 0
        %1289 = vmatpush1.bf16.msra.mxu0 0
        %1290 = vmatprep.subr.bf16.mxu0 0
        %1291 = vmatpush1.bf16.msra.mxu0 0
        %1292 = vmatprep.subr.bf16.mxu0 0
        %1293 = vmatpush1.bf16.msra.mxu0 0
        %1294 = vmatprep.subr.bf16.mxu0 0
        %1295 = vmatpush1.bf16.msra.mxu0 0
        %1296 = vmatprep.subr.bf16.mxu0 0
        %1297 = vmatpush1.bf16.msra.mxu0 0
        %1298 = vmatprep.mubr.bf16.mxu0 0
        %1299 = vmatmul.mubr.bf16.gmra.mrb[0].mxu0 %v1264
        %v1300 = vpop.f32.mrb[0].mxu0
        %v1301 = vadd.f32 %v1249, %v1300
        %v1302 = vpop.f32.mrb[0].mxu0
        %v1303 = vpop.f32.mrb[0].mxu0
        %v1304 = vpop.f32.mrb[0].mxu0
        %1305 = vdwg.mxu0
        %v1306 = vmul.f32 %v1301, 1.702
        %v1307 = vxor.u32 %v1306, 2147483648
        %v1308 = vmul.f32 %v1307, 1.442695
        %v1309 = vpow.pop %v1308
        %v1310 = vadd.f32 %v1309, 1.0
        %v1311 = vrcp.pop %v1310
        %v1312 = vmul.f32 1.0, %v1311
        %v1313 = vmul.f32 %v1301, %v1312
        %v1314 = vld [vmem:[%s8] sm:$0xf]
        %v1315 = vld [vmem:[%s8 + $0x4] sm:$0xf]
        %v1316 = vld [vmem:[%s8 + $0x8] sm:$0xf]
        %v1317 = vld [vmem:[%s8 + $0xc] sm:$0xf]
        %v1318 = vld [vmem:[%s8 + $0x10] sm:$0xf]
        %v1319 = vld [vmem:[%s8 + $0x14] sm:$0xf]
        %v1320 = vld [vmem:[%s8 + $0x18] sm:$0xf]
        %v1321 = vld [vmem:[%s8 + $0x1c] sm:$0xf]
        %v1322 = vld [vmem:[%s8 + $0x20] sm:$0xf]
        %v1323 = vld [vmem:[%s8 + $0x24] sm:$0xf]
        %v1324 = vld [vmem:[%s8 + $0x28] sm:$0xf]
        %v1325 = vld [vmem:[%s8 + $0x2c] sm:$0xf]
        %v1326 = vld [vmem:[%s8 + $0x30] sm:$0xf]
        %v1327 = vld [vmem:[%s8 + $0x34] sm:$0xf]
        %v1328 = vld [vmem:[%s8 + $0x38] sm:$0xf]
        %v1329 = vld [vmem:[%s8 + $0x3c] sm:$0xf]
        %v1330 = vpack.c.bf16 %v1313, %v1313
        %v1347 = vunpack.c.l.b16 %v1314
        %v1348 = vunpack.c.l.b16 %v1315
        %v1349 = vunpack.c.l.b16 %v1316
        %v1350 = vunpack.c.l.b16 %v1317
        %v1351 = vunpack.c.l.b16 %v1318
        %v1352 = vunpack.c.l.b16 %v1319
        %v1353 = vunpack.c.l.b16 %v1320
        %v1354 = vunpack.c.l.b16 %v1321
        %v1355 = vunpack.c.l.b16 %v1322
        %v1356 = vunpack.c.l.b16 %v1323
        %v1357 = vunpack.c.l.b16 %v1324
        %v1358 = vunpack.c.l.b16 %v1325
        %v1359 = vunpack.c.l.b16 %v1326
        %v1360 = vunpack.c.l.b16 %v1327
        %v1361 = vunpack.c.l.b16 %v1328
        %v1362 = vunpack.c.l.b16 %v1329
        %v1363 = vpack.c.b16 %v1348, %v1347
        %v1364 = vpack.c.b16 %v1350, %v1349
        %v1365 = vpack.c.b16 %v1352, %v1351
        %v1366 = vpack.c.b16 %v1354, %v1353
        %v1367 = vpack.c.b16 %v1356, %v1355
        %v1368 = vpack.c.b16 %v1358, %v1357
        %v1369 = vpack.c.b16 %v1360, %v1359
        %v1370 = vpack.c.b16 %v1362, %v1361
        %1379 = vmatprep.subr.bf16.mxu0 0
        %1380 = vmatpush1.bf16.msra.mxu0 %v1363
        %1381 = vmatprep.subr.bf16.mxu0 0
        %1382 = vmatpush1.bf16.msra.mxu0 %v1364
        %1383 = vmatprep.subr.bf16.mxu0 0
        %1384 = vmatpush1.bf16.msra.mxu0 %v1365
        %1385 = vmatprep.subr.bf16.mxu0 0
        %1386 = vmatpush1.bf16.msra.mxu0 %v1366
        %1387 = vmatprep.subr.bf16.mxu0 0
        %1388 = vmatpush1.bf16.msra.mxu0 %v1367
        %1389 = vmatprep.subr.bf16.mxu0 0
        %1390 = vmatpush1.bf16.msra.mxu0 %v1368
        %1391 = vmatprep.subr.bf16.mxu0 0
        %1392 = vmatpush1.bf16.msra.mxu0 %v1369
        %1393 = vmatprep.subr.bf16.mxu0 0
        %1394 = vmatpush1.bf16.msra.mxu0 %v1370
        %1395 = vmatprep.subr.bf16.mxu0 0
        %1396 = vmatpush1.bf16.msra.mxu0 0
        %1397 = vmatprep.subr.bf16.mxu0 0
        %1398 = vmatpush1.bf16.msra.mxu0 0
        %1399 = vmatprep.subr.bf16.mxu0 0
        %1400 = vmatpush1.bf16.msra.mxu0 0
        %1401 = vmatprep.subr.bf16.mxu0 0
        %1402 = vmatpush1.bf16.msra.mxu0 0
        %1403 = vmatprep.subr.bf16.mxu0 0
        %1404 = vmatpush1.bf16.msra.mxu0 0
        %1405 = vmatprep.subr.bf16.mxu0 0
        %1406 = vmatpush1.bf16.msra.mxu0 0
        %1407 = vmatprep.subr.bf16.mxu0 0
        %1408 = vmatpush1.bf16.msra.mxu0 0
        %1409 = vmatprep.subr.bf16.mxu0 0
        %1410 = vmatpush1.bf16.msra.mxu0 0
        %1411 = vmatprep.mubr.bf16.mxu0 0
        %1412 = vmatmul.mubr.bf16.gmra.mrb[0].mxu0 %v1330
        %v1413 = vpop.f32.mrb[0].mxu0
        %v1414 = vadd.f32 0.0, %v1413
        %v1415 = vpop.f32.mrb[0].mxu0
        %v1416 = vpop.f32.mrb[0].mxu0
        %v1417 = vpop.f32.mrb[0].mxu0
        %1418 = vdwg.mxu0
        %v1419 = vadd.f32 %v1215, %v1414
        %v1420 = vlaneseq
        %v1421 = vshrl.u32 %v1420, 7
        %v1422 = vsub.s32 1, %v1421
        %v1423 = vrot.slane %v359, %v1422
        %v1424 = vadd.f32 %v1419, %v1423
        %vm1425 = vcmask 253952
        %v1426 = vsel %vm1425, %v1424, 0.0
        %1427 = vadd.xlane.f32.xlu0 %v1426
        %v1428 = vpop.xlane.xlu0 %1427
        %v1429 = vmul.f32 %v1428, %v512
        %v1430 = vsub.f32 %v1424, %v1429
        %v1431 = vmul.f32 %v1430, %v1430
        %v1432 = vsel %vm1425, %v1431, 0.0
        %1433 = vadd.xlane.f32.xlu0 %v1432
        %v1434 = vpop.xlane.xlu0 %1433
        %v1435 = vmul.f32 %v1434, %v512
        %v1436 = vadd.f32 %v1435, 1e-05
        %v1437 = vrsqrt.pop %v1436
        %v1438 = vmul.f32 %v1430, %v1437
        %v1440 = vrot.slane %v358, 6
        %v1442 = vmul.f32 %v1438, %v1440
        %v1443 = vrot.slane %v358, 7
        %v1445 = vadd.f32 %v1442, %v1443
        %v1446 = vld [vmem:[%s9] sm:$0xf]
        %v1447 = vld [vmem:[%s9 + $0x4] sm:$0xf]
        %v1448 = vld [vmem:[%s9 + $0x8] sm:$0xf]
        %v1449 = vld [vmem:[%s9 + $0xc] sm:$0xf]
        %v1450 = vpack.c.bf16 %v1445, %v1445
        %v1455 = vunpack.c.l.b16 %v1446
        %v1456 = vunpack.c.l.b16 %v1447
        %v1457 = vunpack.c.l.b16 %v1448
        %v1458 = vunpack.c.l.b16 %v1449
        %v1459 = vpack.c.b16 %v1456, %v1455
        %v1460 = vpack.c.b16 %v1458, %v1457
        %v1464 = vsel %vm573, %v1450, 0
        %1466 = vmatprep.subr.bf16.mxu0 0
        %1467 = vmatpush1.bf16.msra.mxu0 %v1459
        %1468 = vmatprep.subr.bf16.mxu0 0
        %1469 = vmatpush1.bf16.msra.mxu0 %v1460
        %1470 = vmatprep.subr.bf16.mxu0 0
        %1471 = vmatpush1.bf16.msra.mxu0 0
        %1472 = vmatprep.subr.bf16.mxu0 0
        %1473 = vmatpush1.bf16.msra.mxu0 0
        %1474 = vmatprep.subr.bf16.mxu0 0
        %1475 = vmatpush1.bf16.msra.mxu0 0
        %1476 = vmatprep.subr.bf16.mxu0 0
        %1477 = vmatpush1.bf16.msra.mxu0 0
        %1478 = vmatprep.subr.bf16.mxu0 0
        %1479 = vmatpush1.bf16.msra.mxu0 0
        %1480 = vmatprep.subr.bf16.mxu0 0
        %1481 = vmatpush1.bf16.msra.mxu0 0
        %1482 = vmatprep.subr.bf16.mxu0 0
        %1483 = vmatpush1.bf16.msra.mxu0 0
        %1484 = vmatprep.subr.bf16.mxu0 0
        %1485 = vmatpush1.bf16.msra.mxu0 0
        %1486 = vmatprep.subr.bf16.mxu0 0
        %1487 = vmatpush1.bf16.msra.mxu0 0
        %1488 = vmatprep.subr.bf16.mxu0 0
        %1489 = vmatpush1.bf16.msra.mxu0 0
        %1490 = vmatprep.subr.bf16.mxu0 0
        %1491 = vmatpush1.bf16.msra.mxu0 0
        %1492 = vmatprep.subr.bf16.mxu0 0
        %1493 = vmatpush1.bf16.msra.mxu0 0
        %1494 = vmatprep.subr.bf16.mxu0 0
        %1495 = vmatpush1.bf16.msra.mxu0 0
        %1496 = vmatprep.subr.bf16.mxu0 0
        %1497 = vmatpush1.bf16.msra.mxu0 0
        %1498 = vmatprep.mubr.bf16.mxu0 0
        %1499 = vmatmul.mubr.bf16.gmra.mrb[0].mxu0 %v1464
        %v1500 = vpop.f32.mrb[0].mxu0
        %v1501 = vadd.f32 0.0, %v1500
        %v1502 = vpop.f32.mrb[0].mxu0
        %v1503 = vpop.f32.mrb[0].mxu0
        %v1504 = vpop.f32.mrb[0].mxu0
        %1505 = vdwg.mxu0
        %v1506 = vmul.f32 %v1501, %v1501
        %vm1507 = vcmask 122880
        %v1508 = vsel %vm1507, %v1506, 0.0
        %1509 = vadd.xlane.f32.xlu0 %v1508
        %v1510 = vpop.xlane.xlu0 %1509
        %v1511 = vmax.f32 %v1510, 1e-24
        %v1512 = vrsqrt.pop %v1511
        %v1513 = vmul.f32 %v1501, %v1512
        %1514 = vst.msk [vmem:[%s351] sm:$0x1] %vm1507, %v1513
        %s1515 = sand.u32 %s247, 1
        %s1516 = scalar_lea.sflag [#allocation3], %s1515
        %s1517 = sand.u32 %s247, 1
        %s1518 = scalar_lea.vmem [#allocation2], %s1517
        // Predicated region
        $region61: #{tpu_custom_call.1} parent=59 // pred_check
          %p1519 = pneg %p257
        $region62: #{tpu_custom_call.1} parent=59 // pred_check_branch
          %1521 = sbr.rel (%p1519) target = $region64
        $region63: #{tpu_custom_call.1} parent=59 // pred_region
          %s1523 = ssub.s32 16, 16
          %1524 = vsyncadd %s1516, %s1523
          %s1525 = smul.addr %s24, 16
          %s1526 = scalar_lea.hbm %s10, %s1525
          %s1528 = sshll.u32 %s1518, 4
          %s1529 = int_to_ptr.vmem [resolvable:$true] %s1528
          %1531 = dma.vmem_to_hbm [thread:$0]  %s1529, 16, %s1526, %s1516
        $region64: #{tpu_custom_call.1} parent=59 // pred_fallthru
          _
      $region60: #{tpu_custom_call.1} parent=5 // pred_fallthru
        _
      %p1532 = scmp.le.s32.totalorder 2, %s19
      // Predicated region
      $region65: #{tpu_custom_call.1} parent=5 // pred_check
        %p1533 = pneg %p1532
      $region66: #{tpu_custom_call.1} parent=5 // pred_check_branch
        %1535 = sbr.rel (%p1533) target = $region68
      $region67: #{tpu_custom_call.1} parent=5 // pred_region
        %s1536 = ssub.s32 %s19, 2
        // Predicated region
        $region69: #{tpu_custom_call.1} parent=67 // pred_check
          %p1537 = pneg %p263
        $region70: #{tpu_custom_call.1} parent=67 // pred_check_branch
          %1539 = sbr.rel (%p1537) target = $region72
        $region71: #{tpu_custom_call.1} parent=67 // pred_region
          %s1540 = sand.u32 %s248, 1
          %s1541 = scalar_lea.sflag [#allocation3], %s1540
          %s1542 = sand.u32 %s248, 1
          %s1543 = scalar_lea.vmem [#allocation2], %s1542
          %1544 = dma.done %s1541, 16
        $region72: #{tpu_custom_call.1} parent=67 // pred_fallthru
          _
      $region68: #{tpu_custom_call.1} parent=5 // pred_fallthru
        _
    $region6: #{tpu_custom_call.1} parent=1 // loop_footer
      %s23 = sadd.s32 1, %s19
    $region7: #{tpu_custom_call.1} parent=1 // loop_footer_branch
      %18 = sbr.rel target = $region3
    $region8: #{tpu_custom_call.1} parent=1 // loop_exit
      _
    %1545 = vsyncpa [#allocation3], 1
    %s1546 = scalar_lea.sflag [#allocation3], 1
    %1547 = vsyncpa %s1546, 1

</llo_original>
